<compile_context>
chip_gen: v7x
topology: tpu7x:2x2x1
jax: 0.10.0
libtpu: 0.0.40
codegen_flags: <defaults>
</compile_context>

<pallas_src>
import functools

import jax
import jax.numpy as jnp
from jax.experimental import pallas as pl
from jax.experimental.pallas import tpu as pltpu


def _round_up(v, m):
    return ((v + m - 1) // m) * m


def _pick_tiles(n_pad):
    """Row tile tm and contraction tile tk; both divide n_pad (mult of 128).

    tk is as large as possible (big mem-bound blocks); tm is capped at
    n_pad//2 whenever possible so the parallel row axis has >=2 blocks
    (v7x megacore sharding)."""
    def pick(cands, cap):
        for c in cands:
            if c <= cap and n_pad % c == 0:
                return c
        return 128

    tk = pick((2048, 1024, 512, 256, 128), n_pad)
    row_cap = n_pad // 2 if n_pad >= 256 else n_pad
    tm = pick((512, 256, 128), row_cap)
    return tm, tk


def _use_weight_first(f_in_pad, f_out_pad):
    # Narrower contraction output => fewer s bytes + smaller accumulator while
    # the kernel is HBM-bound.  (Once MXU-bound, v6e/v7x would prefer the
    # wider output for MXU column utilization -- revisit then.)
    return f_out_pad < f_in_pad


# --------------------------- prologue kernels --------------------------------
def _support_kernel(x_ref, gwr_ref, s_ref):
    # s = x * gwr   (bf16 elementwise, computed once per layer, not per block)
    s_ref[...] = x_ref[...] * gwr_ref[...]


def _support_proj_kernel(x_ref, gwr_ref, w_ref, s_ref):
    # s = (x * gwr) @ W  (weight_first path: project before the big adj matmul)
    sup = x_ref[...] * gwr_ref[...]
    s_ref[...] = jnp.dot(sup, w_ref[...],
                         preferred_element_type=jnp.float32).astype(s_ref.dtype)


# ----------------------------- main kernel -----------------------------------
def _adj_matmul_kernel(*refs, use_tanh, apply_weight, s_resident, tk):
    """Grid = (row blocks, contraction blocks).  Accumulates adj @ s into a
    resident f32 scratch; applies weight/bias/tanh once at the last k step."""
    if apply_weight:
        s_ref, adj_ref, w_ref, b_ref, out_ref, acc_ref = refs
    else:
        s_ref, adj_ref, b_ref, out_ref, acc_ref = refs

    k = pl.program_id(1)

    @pl.when(k == 0)
    def _():
        acc_ref[...] = jnp.zeros_like(acc_ref)

    if s_resident:
        # s is fully VMEM-resident (loaded once); slice the current k strip.
        off = pl.multiple_of(k * tk, tk)
        s_tile = s_ref[pl.ds(off, tk), :]
    else:
        s_tile = s_ref[...]

    # MXU: bf16 inputs, f32 accumulation.
    acc_ref[...] += jnp.dot(adj_ref[...], s_tile,
                            preferred_element_type=jnp.float32)

    @pl.when(k == pl.num_programs(1) - 1)
    def _():
        out = acc_ref[...]
        if apply_weight:
            # Small (tm, F_in) @ (F_in, F_out) f32 projection -- negligible.
            out = jnp.dot(out, w_ref[...], preferred_element_type=jnp.float32)
        out = out + b_ref[...]          # bias (1, F_out) broadcasts over rows
        if use_tanh:
            out = jnp.tanh(out)         # EUP
        out_ref[...] = out.astype(out_ref.dtype)


# ------------------------------ layer wrapper ---------------------------------
def _gw_layer_padded(h_pad, adj_pad, gwr_weight, weight, bias, N, *,
                     activation_tanh, out_dtype):
    """One GWGraphConvolution layer on padded operands.

    h_pad   : (N_pad, F_in)  bf16, padded (padded entries are neutralized by
              the zero-padded gwr/adj/weight).
    adj_pad : (N_pad, N_pad) bf16, padded once for the whole network.
    returns : (N_pad, F_out) out_dtype, padded.
    """
    N_pad, F_in = h_pad.shape
    f_in = gwr_weight.shape[1]
    f_out = weight.shape[1]
    F_out = _round_up(f_out, 128)
    assert F_in == _round_up(f_in, 128)

    tm, tk = _pick_tiles(N_pad)
    weight_first = _use_weight_first(F_in, F_out)
    acc_width = F_out if weight_first else F_in

    # ---- per-layer parameter padding (tiny) --------------------------------
    gwr_p = jnp.zeros((N_pad, F_in), jnp.bfloat16).at[:N, :f_in].set(
        gwr_weight.astype(jnp.bfloat16))
    b_p = jnp.zeros((1, F_out), jnp.float32).at[0, :f_out].set(
        bias.astype(jnp.float32).reshape(f_out))
    if weight_first:
        # Pre-cast to bf16 in the wrapper (no per-step cast in the kernel).
        w_p = jnp.zeros((F_in, F_out), jnp.bfloat16).at[:f_in, :f_out].set(
            weight.astype(jnp.bfloat16))
    else:
        w_p = jnp.zeros((F_in, F_out), jnp.float32).at[:f_in, :f_out].set(
            weight.astype(jnp.float32))

    # ---- prologue: s = x*gwr (optionally @W), computed once, stored bf16 ----
    if weight_first:
        s = pl.pallas_call(
            _support_proj_kernel,
            out_shape=jax.ShapeDtypeStruct((N_pad, acc_width), jnp.bfloat16),
            grid_spec=pltpu.PrefetchScalarGridSpec(
                num_scalar_prefetch=0,
                grid=(N_pad // tm,),
                in_specs=[
                    pl.BlockSpec((tm, F_in), lambda i: (i, 0)),
                    pl.BlockSpec((tm, F_in), lambda i: (i, 0)),
                    pl.BlockSpec((F_in, F_out), lambda i: (0, 0)),
                ],
                out_specs=pl.BlockSpec((tm, acc_width), lambda i: (i, 0)),
            ),
            compiler_params=pltpu.CompilerParams(
                dimension_semantics=("parallel",)),
        )(h_pad, gwr_p, w_p)
    else:
        s = pl.pallas_call(
            _support_kernel,
            out_shape=jax.ShapeDtypeStruct((N_pad, acc_width), jnp.bfloat16),
            grid_spec=pltpu.PrefetchScalarGridSpec(
                num_scalar_prefetch=0,
                grid=(N_pad // tm,),
                in_specs=[
                    pl.BlockSpec((tm, F_in), lambda i: (i, 0)),
                    pl.BlockSpec((tm, F_in), lambda i: (i, 0)),
                ],
                out_specs=pl.BlockSpec((tm, acc_width), lambda i: (i, 0)),
            ),
            compiler_params=pltpu.CompilerParams(
                dimension_semantics=("parallel",)),
        )(h_pad, gwr_p)

    # ---- main kernel: out = act(adj @ s [@W] + b), grid (rows x contraction)
    out_itemsize = jnp.dtype(out_dtype).itemsize
    s_resident_bytes = N_pad * acc_width * 2
    # Keep s fully VMEM-resident (DMAed once for the whole grid) when small.
    s_resident = s_resident_bytes <= 8 * 1024 * 1024

    nbuf = 2
    footprint = (nbuf * tm * tk * 2                                  # adj
                 + nbuf * (s_resident_bytes if s_resident
                           else tk * acc_width * 2)                  # s
                 + nbuf * tm * F_out * out_itemsize                  # out
                 + nbuf * 1 * F_out * 4                              # bias
                 + tm * acc_width * 4)                               # f32 acc
    if not weight_first:
        footprint += nbuf * F_in * F_out * 4                         # weight
    # Headroom for compiler scratch; never request more than 48 MiB so we fit
    # inside v7x's 64 MiB physical VMEM (v5e/v6e have plenty more).
    vmem_limit = min(48 * 1024 * 1024, max(2 * footprint, 16 * 1024 * 1024))

    if s_resident:
        s_spec = pl.BlockSpec((N_pad, acc_width), lambda i, k: (0, 0))
    else:
        s_spec = pl.BlockSpec((tk, acc_width), lambda i, k: (k, 0))

    in_specs = [
        s_spec,
        pl.BlockSpec((tm, tk), lambda i, k: (i, k)),                 # adj tile
    ]
    operands = [s, adj_pad]
    if not weight_first:
        in_specs.append(pl.BlockSpec((F_in, F_out), lambda i, k: (0, 0)))
        operands.append(w_p)
    in_specs.append(pl.BlockSpec((1, F_out), lambda i, k: (0, 0)))
    operands.append(b_p)

    kernel = functools.partial(
        _adj_matmul_kernel, use_tanh=activation_tanh,
        apply_weight=not weight_first, s_resident=s_resident, tk=tk)

    out_pad = pl.pallas_call(
        kernel,
        out_shape=jax.ShapeDtypeStruct((N_pad, F_out), out_dtype),
        grid_spec=pltpu.PrefetchScalarGridSpec(
            num_scalar_prefetch=0,
            grid=(N_pad // tm, N_pad // tk),
            in_specs=in_specs,
            out_specs=pl.BlockSpec((tm, F_out), lambda i, k: (i, 0)),
            scratch_shapes=[pltpu.VMEM((tm, acc_width), jnp.float32)],
        ),
        compiler_params=pltpu.CompilerParams(
            dimension_semantics=("parallel", "arbitrary"),
            vmem_limit_bytes=vmem_limit,
        ),
    )(*operands)

    return out_pad


# ------------------------------- full model -----------------------------------
def gwgcn_forward(x, adj, params):
    """GWGCN.forward: hidden GW-conv layers (tanh) then output layer (no act)."""
    N, f_in = x.shape
    n_classes = params["out"]["weight"].shape[1]
    N_pad = _round_up(N, 128)

    # Pad + bf16-cast the N^2 adjacency ONCE for the whole network.
    adj_pad = jnp.zeros((N_pad, N_pad), jnp.bfloat16).at[:N, :N].set(
        adj.astype(jnp.bfloat16))

    F_in = _round_up(f_in, 128)
    h = jnp.zeros((N_pad, F_in), jnp.bfloat16).at[:N, :f_in].set(
        x.astype(jnp.bfloat16))

    # Hidden activations stay padded bf16 between layers (padded rows/cols are
    # neutralized by the zero-padded gwr/adj/weight of the next layer).
    for p in params["hidden"]:
        h = _gw_layer_padded(h, adj_pad, p["gwr_weight"], p["weight"],
                             p["bias"], N, activation_tanh=True,
                             out_dtype=jnp.bfloat16)
    p = params["out"]
    out_pad = _gw_layer_padded(h, adj_pad, p["gwr_weight"], p["weight"],
                               p["bias"], N, activation_tanh=False,
                               out_dtype=jnp.float32)
    return out_pad[:N, :n_classes]


def init_gw_layer_params(N, f_in, f_out):
    """Matches GWGraphConvolution.initialize_weights(): ones weights, zero bias."""
    return dict(
        gwr_weight=jnp.ones((N, f_in), jnp.float32),
        weight=jnp.ones((f_in, f_out), jnp.float32),
        bias=jnp.zeros((f_out,), jnp.float32),
    )


def gwgcn_reference(x, adj, params):
    """Plain-JAX reference that mirrors the kernel's bf16 rounding exactly."""
    adj_b = adj.astype(jnp.bfloat16)

    def layer(h_b, p, tanh):
        f_in = p["gwr_weight"].shape[1]
        f_out = p["weight"].shape[1]
        weight_first = _use_weight_first(_round_up(f_in, 128),
                                         _round_up(f_out, 128))
        g_b = p["gwr_weight"].astype(jnp.bfloat16)
        s = h_b * g_b                                              # bf16
        if weight_first:
            s = jnp.dot(s, p["weight"].astype(jnp.bfloat16),
                        preferred_element_type=jnp.float32).astype(jnp.bfloat16)
        acc = jnp.dot(adj_b, s, preferred_element_type=jnp.float32)
        if not weight_first:
            acc = jnp.dot(acc, p["weight"].astype(jnp.float32),
                          preferred_element_type=jnp.float32)
        out = acc + p["bias"].astype(jnp.float32)
        if tanh:
            out = jnp.tanh(out)
        return out

    h_b = x.astype(jnp.bfloat16)
    for p in params["hidden"]:
        h_b = layer(h_b, p, True).astype(jnp.bfloat16)
    return layer(h_b, params["out"], False)


def _make_adj(key, N):
    a = jnp.abs(jax.random.normal(key, (N, N), dtype=jnp.float32)) + jnp.eye(N)
    return a / jnp.sum(a, axis=1, keepdims=True)


if __name__ == "__main__":
    fwd = jax.jit(gwgcn_forward)

    # ---- Test 1: module-default config (ones weights, zero bias) -----------
    N, f_in, n_classes = 8, 4, 3
    hidden = [16]
    key = jax.random.PRNGKey(0)
    kx, ka, k2 = jax.random.split(key, 3)
    x = jax.random.normal(kx, (N, f_in), dtype=jnp.float32)
    adj = _make_adj(ka, N)

    params = {"hidden": [], "out": None}
    fi = f_in
    for fo in hidden:
        params["hidden"].append(init_gw_layer_params(N, fi, fo))
        fi = fo
    params["out"] = init_gw_layer_params(N, fi, n_classes)

    out = jax.block_until_ready(fwd(x, adj, params))
    ref = gwgcn_reference(x, adj, params)
    assert out.shape == (N, n_classes)
    assert jnp.allclose(out, ref, atol=2e-3, rtol=2e-3), (
        f"test1 max abs err = {jnp.max(jnp.abs(out - ref))}")

    # ---- Test 2: random params, f_in=200 -> exercises the weight_first path
    N2, f_in2, n_classes2 = 16, 200, 3
    hidden2 = [16]
    keys = jax.random.split(k2, 10)
    x2 = jax.random.normal(keys[0], (N2, f_in2), dtype=jnp.float32)
    adj2 = _make_adj(keys[1], N2)

    def rand_layer(k, N_, fi_, fo_):
        k1, k2_, k3 = jax.random.split(k, 3)
        return dict(
            gwr_weight=jax.random.normal(k1, (N_, fi_), jnp.float32),
            weight=jax.random.normal(k2_, (fi_, fo_), jnp.float32) / jnp.sqrt(fi_),
            bias=0.1 * jax.random.normal(k3, (fo_,), jnp.float32),
        )

    params2 = {"hidden": [], "out": None}
    fi = f_in2
    for i, fo in enumerate(hidden2):
        params2["hidden"].append(rand_layer(keys[2 + i], N2, fi, fo))
        fi = fo
    params2["out"] = rand_layer(keys[5], N2, fi, n_classes2)

    out2 = jax.block_until_ready(fwd(x2, adj2, params2))
    ref2 = gwgcn_reference(x2, adj2, params2)
    assert out2.shape == (N2, n_classes2)
    assert jnp.allclose(out2, ref2, atol=2e-3, rtol=2e-3), (
        f"test2 max abs err = {jnp.max(jnp.abs(out2 - ref2))}")

    print("KERNEL_OK")
</pallas_src>

<mosaic_0001>
module attributes {stable_mosaic.version = 11 : i64} {
  func.func @_adj_matmul_kernel(%arg0: i32, %arg1: i32, %arg2: memref<128x128xbf16, #tpu.memory_space<vmem>>, %arg3: memref<128x128xbf16, #tpu.memory_space<vmem>>, %arg4: memref<128x128xf32, #tpu.memory_space<vmem>>, %arg5: memref<1x128xf32, #tpu.memory_space<vmem>>, %arg6: memref<128x128xbf16, #tpu.memory_space<vmem>>, %arg7: memref<128x128xf32, #tpu.memory_space<vmem>>) attributes {dimension_semantics = [#tpu.dimension_semantics<parallel>, #tpu.dimension_semantics<arbitrary>], iteration_bounds = array<i64: 1, 1>, scalar_prefetch = 0 : i64, scratch_operands = 1 : i64, tpu.core_type = #tpu.core_type<tc>, window_params = [{pipeline_mode = #tpu.pipeline_mode<synchronous>, transform_indices = @transform_0, window_bounds = array<i64: 128, 128>}, {transform_indices = @transform_1, window_bounds = array<i64: 128, 128>}, {pipeline_mode = #tpu.pipeline_mode<synchronous>, transform_indices = @transform_2, window_bounds = array<i64: 128, 128>}, {pipeline_mode = #tpu.pipeline_mode<synchronous>, transform_indices = @transform_3, window_bounds = array<i64: 1, 128>}, {transform_indices = @transform_4, window_bounds = array<i64: 128, 128>}]} {
    %c0_i32 = arith.constant 0 : i32
    %0 = arith.cmpi eq, %arg1, %c0_i32 : i32
    %1 = arith.extui %0 : i1 to i32
    %c0_i32_0 = arith.constant 0 : i32
    %2 = arith.cmpi ne, %1, %c0_i32_0 : i32
    scf.if %2 {
      %cst_9 = arith.constant 0.000000e+00 : f32
      %15 = vector.broadcast %cst_9 : f32 to vector<128x128xf32>
      %c0_10 = arith.constant 0 : index
      %c0_11 = arith.constant 0 : index
      %16 = vector.load %arg7[%c0_10, %c0_11] : memref<128x128xf32, #tpu.memory_space<vmem>>, vector<128x128xf32>
      tpu.vector_store %arg7[%c0_10, %c0_11], %15 {strides = array<i32>} : memref<128x128xf32, #tpu.memory_space<vmem>>, vector<128x128xf32>,
    } else {
    }
    %c128_i32 = arith.constant 128 : i32
    %3 = arith.muli %arg1, %c128_i32 : i32
    %4 = tpu.assume_multiple %3, 128 : i32
    %5 = arith.index_cast %4 : i32 to index
    %c0 = arith.constant 0 : index
    %6 = vector.load %arg2[%5, %c0] : memref<128x128xbf16, #tpu.memory_space<vmem>>, vector<128x128xbf16>
    %c0_1 = arith.constant 0 : index
    %c0_2 = arith.constant 0 : index
    %7 = vector.load %arg7[%c0_1, %c0_2] : memref<128x128xf32, #tpu.memory_space<vmem>>, vector<128x128xf32>
    %c0_3 = arith.constant 0 : index
    %c0_4 = arith.constant 0 : index
    %8 = vector.load %arg3[%c0_3, %c0_4] : memref<128x128xbf16, #tpu.memory_space<vmem>>, vector<128x128xbf16>
    %cst = arith.constant dense<0.000000e+00> : vector<128x128xf32>
    %9 = tpu.matmul %8, %6, %cst {dimension_numbers = #tpu.dot_dimension_numbers<[1], [0], [0], [1], [0, 0, 1, 1], [], []>} : vector<128x128xbf16>, vector<128x128xbf16>, vector<128x128xf32> -> vector<128x128xf32>
    %10 = arith.addf %7, %9 : vector<128x128xf32>
    %c0_5 = arith.constant 0 : index
    %c0_6 = arith.constant 0 : index
    %11 = vector.load %arg7[%c0_5, %c0_6] : memref<128x128xf32, #tpu.memory_space<vmem>>, vector<128x128xf32>
    tpu.vector_store %arg7[%c0_5, %c0_6], %10 {strides = array<i32>} : memref<128x128xf32, #tpu.memory_space<vmem>>, vector<128x128xf32>,
    %c0_i32_7 = arith.constant 0 : i32
    %12 = arith.cmpi eq, %arg1, %c0_i32_7 : i32
    %13 = arith.extui %12 : i1 to i32
    %c0_i32_8 = arith.constant 0 : i32
    %14 = arith.cmpi ne, %13, %c0_i32_8 : i32
    scf.if %14 {
      %c0_9 = arith.constant 0 : index
      %c0_10 = arith.constant 0 : index
      %15 = vector.load %arg7[%c0_9, %c0_10] : memref<128x128xf32, #tpu.memory_space<vmem>>, vector<128x128xf32>
      %c0_11 = arith.constant 0 : index
      %c0_12 = arith.constant 0 : index
      %16 = vector.load %arg4[%c0_11, %c0_12] : memref<128x128xf32, #tpu.memory_space<vmem>>, vector<128x128xf32>
      %cst_13 = arith.constant dense<0.000000e+00> : vector<128x128xf32>
      %17 = tpu.matmul %15, %16, %cst_13 {dimension_numbers = #tpu.dot_dimension_numbers<[1], [0], [0], [1], [0, 0, 1, 1], [], []>} : vector<128x128xf32>, vector<128x128xf32>, vector<128x128xf32> -> vector<128x128xf32>
      %c0_14 = arith.constant 0 : index
      %c0_15 = arith.constant 0 : index
      %18 = vector.load %arg5[%c0_14, %c0_15] : memref<1x128xf32, #tpu.memory_space<vmem>>, vector<1x128xf32>
      %19 = vector.broadcast %18 : vector<1x128xf32> to vector<128x128xf32>
      %20 = arith.addf %17, %19 : vector<128x128xf32>
      %21 = math.tanh %20 : vector<128x128xf32>
      %22 = arith.truncf %21 : vector<128x128xf32> to vector<128x128xbf16>
      %c0_16 = arith.constant 0 : index
      %c0_17 = arith.constant 0 : index
      %23 = vector.load %arg6[%c0_16, %c0_17] : memref<128x128xbf16, #tpu.memory_space<vmem>>, vector<128x128xbf16>
      tpu.vector_store %arg6[%c0_16, %c0_17], %22 {strides = array<i32>} : memref<128x128xbf16, #tpu.memory_space<vmem>>, vector<128x128xbf16>,
    } else {
    }
    return
  }
  func.func @transform_0(%arg0: i32, %arg1: i32) -> (i32, i32) {
    %c0_i32 = arith.constant 0 : i32
    %c0_i32_0 = arith.constant 0 : i32
    %c0_i32_1 = arith.constant 0 : i32
    return %c0_i32, %c0_i32_0 : i32, i32
  }
  func.func @transform_1(%arg0: i32, %arg1: i32) -> (i32, i32) {
    %c0_i32 = arith.constant 0 : i32
    return %arg0, %arg1 : i32, i32
  }
  func.func @transform_2(%arg0: i32, %arg1: i32) -> (i32, i32) {
    %c0_i32 = arith.constant 0 : i32
    %c0_i32_0 = arith.constant 0 : i32
    %c0_i32_1 = arith.constant 0 : i32
    return %c0_i32, %c0_i32_0 : i32, i32
  }
  func.func @transform_3(%arg0: i32, %arg1: i32) -> (i32, i32) {
    %c0_i32 = arith.constant 0 : i32
    %c0_i32_0 = arith.constant 0 : i32
    %c0_i32_1 = arith.constant 0 : i32
    return %c0_i32, %c0_i32_0 : i32, i32
  }
  func.func @transform_4(%arg0: i32, %arg1: i32) -> (i32, i32) {
    %c0_i32 = arith.constant 0 : i32
    %c0_i32_0 = arith.constant 0 : i32
    return %arg0, %c0_i32 : i32, i32
  }
}

module attributes {stable_mosaic.version = 11 : i64} {
  func.func @_support_kernel(%arg0: i32, %arg1: memref<128x128xbf16, #tpu.memory_space<vmem>>, %arg2: memref<128x128xbf16, #tpu.memory_space<vmem>>, %arg3: memref<128x128xbf16, #tpu.memory_space<vmem>>) attributes {dimension_semantics = [#tpu.dimension_semantics<parallel>], iteration_bounds = array<i64: 1>, scalar_prefetch = 0 : i64, scratch_operands = 0 : i64, tpu.core_type = #tpu.core_type<tc>, window_params = [{transform_indices = @transform_0, window_bounds = array<i64: 128, 128>}, {transform_indices = @transform_1, window_bounds = array<i64: 128, 128>}, {transform_indices = @transform_2, window_bounds = array<i64: 128, 128>}]} {
    %c0 = arith.constant 0 : index
    %c0_0 = arith.constant 0 : index
    %0 = vector.load %arg1[%c0, %c0_0] : memref<128x128xbf16, #tpu.memory_space<vmem>>, vector<128x128xbf16>
    %c0_1 = arith.constant 0 : index
    %c0_2 = arith.constant 0 : index
    %1 = vector.load %arg2[%c0_1, %c0_2] : memref<128x128xbf16, #tpu.memory_space<vmem>>, vector<128x128xbf16>
    %2 = arith.mulf %0, %1 : vector<128x128xbf16>
    %c0_3 = arith.constant 0 : index
    %c0_4 = arith.constant 0 : index
    %3 = vector.load %arg3[%c0_3, %c0_4] : memref<128x128xbf16, #tpu.memory_space<vmem>>, vector<128x128xbf16>
    tpu.vector_store %arg3[%c0_3, %c0_4], %2 {strides = array<i32>} : memref<128x128xbf16, #tpu.memory_space<vmem>>, vector<128x128xbf16>,
    return
  }
  func.func @transform_0(%arg0: i32) -> (i32, i32) {
    %c0_i32 = arith.constant 0 : i32
    %c0_i32_0 = arith.constant 0 : i32
    return %arg0, %c0_i32 : i32, i32
  }
  func.func @transform_1(%arg0: i32) -> (i32, i32) {
    %c0_i32 = arith.constant 0 : i32
    %c0_i32_0 = arith.constant 0 : i32
    return %arg0, %c0_i32 : i32, i32
  }
  func.func @transform_2(%arg0: i32) -> (i32, i32) {
    %c0_i32 = arith.constant 0 : i32
    %c0_i32_0 = arith.constant 0 : i32
    return %arg0, %c0_i32 : i32, i32
  }
}

module attributes {stable_mosaic.version = 11 : i64} {
  func.func @_adj_matmul_kernel(%arg0: i32, %arg1: i32, %arg2: memref<128x128xbf16, #tpu.memory_space<vmem>>, %arg3: memref<128x128xbf16, #tpu.memory_space<vmem>>, %arg4: memref<128x128xf32, #tpu.memory_space<vmem>>, %arg5: memref<1x128xf32, #tpu.memory_space<vmem>>, %arg6: memref<128x128xf32, #tpu.memory_space<vmem>>, %arg7: memref<128x128xf32, #tpu.memory_space<vmem>>) attributes {dimension_semantics = [#tpu.dimension_semantics<parallel>, #tpu.dimension_semantics<arbitrary>], iteration_bounds = array<i64: 1, 1>, scalar_prefetch = 0 : i64, scratch_operands = 1 : i64, tpu.core_type = #tpu.core_type<tc>, window_params = [{pipeline_mode = #tpu.pipeline_mode<synchronous>, transform_indices = @transform_0, window_bounds = array<i64: 128, 128>}, {transform_indices = @transform_1, window_bounds = array<i64: 128, 128>}, {pipeline_mode = #tpu.pipeline_mode<synchronous>, transform_indices = @transform_2, window_bounds = array<i64: 128, 128>}, {pipeline_mode = #tpu.pipeline_mode<synchronous>, transform_indices = @transform_3, window_bounds = array<i64: 1, 128>}, {transform_indices = @transform_4, window_bounds = array<i64: 128, 128>}]} {
    %c0_i32 = arith.constant 0 : i32
    %0 = arith.cmpi eq, %arg1, %c0_i32 : i32
    %1 = arith.extui %0 : i1 to i32
    %c0_i32_0 = arith.constant 0 : i32
    %2 = arith.cmpi ne, %1, %c0_i32_0 : i32
    scf.if %2 {
      %cst_9 = arith.constant 0.000000e+00 : f32
      %15 = vector.broadcast %cst_9 : f32 to vector<128x128xf32>
      %c0_10 = arith.constant 0 : index
      %c0_11 = arith.constant 0 : index
      %16 = vector.load %arg7[%c0_10, %c0_11] : memref<128x128xf32, #tpu.memory_space<vmem>>, vector<128x128xf32>
      tpu.vector_store %arg7[%c0_10, %c0_11], %15 {strides = array<i32>} : memref<128x128xf32, #tpu.memory_space<vmem>>, vector<128x128xf32>,
    } else {
    }
    %c128_i32 = arith.constant 128 : i32
    %3 = arith.muli %arg1, %c128_i32 : i32
    %4 = tpu.assume_multiple %3, 128 : i32
    %5 = arith.index_cast %4 : i32 to index
    %c0 = arith.constant 0 : index
    %6 = vector.load %arg2[%5, %c0] : memref<128x128xbf16, #tpu.memory_space<vmem>>, vector<128x128xbf16>
    %c0_1 = arith.constant 0 : index
    %c0_2 = arith.constant 0 : index
    %7 = vector.load %arg7[%c0_1, %c0_2] : memref<128x128xf32, #tpu.memory_space<vmem>>, vector<128x128xf32>
    %c0_3 = arith.constant 0 : index
    %c0_4 = arith.constant 0 : index
    %8 = vector.load %arg3[%c0_3, %c0_4] : memref<128x128xbf16, #tpu.memory_space<vmem>>, vector<128x128xbf16>
    %cst = arith.constant dense<0.000000e+00> : vector<128x128xf32>
    %9 = tpu.matmul %8, %6, %cst {dimension_numbers = #tpu.dot_dimension_numbers<[1], [0], [0], [1], [0, 0, 1, 1], [], []>} : vector<128x128xbf16>, vector<128x128xbf16>, vector<128x128xf32> -> vector<128x128xf32>
    %10 = arith.addf %7, %9 : vector<128x128xf32>
    %c0_5 = arith.constant 0 : index
    %c0_6 = arith.constant 0 : index
    %11 = vector.load %arg7[%c0_5, %c0_6] : memref<128x128xf32, #tpu.memory_space<vmem>>, vector<128x128xf32>
    tpu.vector_store %arg7[%c0_5, %c0_6], %10 {strides = array<i32>} : memref<128x128xf32, #tpu.memory_space<vmem>>, vector<128x128xf32>,
    %c0_i32_7 = arith.constant 0 : i32
    %12 = arith.cmpi eq, %arg1, %c0_i32_7 : i32
    %13 = arith.extui %12 : i1 to i32
    %c0_i32_8 = arith.constant 0 : i32
    %14 = arith.cmpi ne, %13, %c0_i32_8 : i32
    scf.if %14 {
      %c0_9 = arith.constant 0 : index
      %c0_10 = arith.constant 0 : index
      %15 = vector.load %arg7[%c0_9, %c0_10] : memref<128x128xf32, #tpu.memory_space<vmem>>, vector<128x128xf32>
      %c0_11 = arith.constant 0 : index
      %c0_12 = arith.constant 0 : index
      %16 = vector.load %arg4[%c0_11, %c0_12] : memref<128x128xf32, #tpu.memory_space<vmem>>, vector<128x128xf32>
      %cst_13 = arith.constant dense<0.000000e+00> : vector<128x128xf32>
      %17 = tpu.matmul %15, %16, %cst_13 {dimension_numbers = #tpu.dot_dimension_numbers<[1], [0], [0], [1], [0, 0, 1, 1], [], []>} : vector<128x128xf32>, vector<128x128xf32>, vector<128x128xf32> -> vector<128x128xf32>
      %c0_14 = arith.constant 0 : index
      %c0_15 = arith.constant 0 : index
      %18 = vector.load %arg5[%c0_14, %c0_15] : memref<1x128xf32, #tpu.memory_space<vmem>>, vector<1x128xf32>
      %19 = vector.broadcast %18 : vector<1x128xf32> to vector<128x128xf32>
      %20 = arith.addf %17, %19 : vector<128x128xf32>
      %c0_16 = arith.constant 0 : index
      %c0_17 = arith.constant 0 : index
      %21 = vector.load %arg6[%c0_16, %c0_17] : memref<128x128xf32, #tpu.memory_space<vmem>>, vector<128x128xf32>
      tpu.vector_store %arg6[%c0_16, %c0_17], %20 {strides = array<i32>} : memref<128x128xf32, #tpu.memory_space<vmem>>, vector<128x128xf32>,
    } else {
    }
    return
  }
  func.func @transform_0(%arg0: i32, %arg1: i32) -> (i32, i32) {
    %c0_i32 = arith.constant 0 : i32
    %c0_i32_0 = arith.constant 0 : i32
    %c0_i32_1 = arith.constant 0 : i32
    return %c0_i32, %c0_i32_0 : i32, i32
  }
  func.func @transform_1(%arg0: i32, %arg1: i32) -> (i32, i32) {
    %c0_i32 = arith.constant 0 : i32
    return %arg0, %arg1 : i32, i32
  }
  func.func @transform_2(%arg0: i32, %arg1: i32) -> (i32, i32) {
    %c0_i32 = arith.constant 0 : i32
    %c0_i32_0 = arith.constant 0 : i32
    %c0_i32_1 = arith.constant 0 : i32
    return %c0_i32, %c0_i32_0 : i32, i32
  }
  func.func @transform_3(%arg0: i32, %arg1: i32) -> (i32, i32) {
    %c0_i32 = arith.constant 0 : i32
    %c0_i32_0 = arith.constant 0 : i32
    %c0_i32_1 = arith.constant 0 : i32
    return %c0_i32, %c0_i32_0 : i32, i32
  }
  func.func @transform_4(%arg0: i32, %arg1: i32) -> (i32, i32) {
    %c0_i32 = arith.constant 0 : i32
    %c0_i32_0 = arith.constant 0 : i32
    return %arg0, %c0_i32 : i32, i32
  }
}

</mosaic_0001>

<llo_original>
// kernel: gwgcn_forward.4
$region0: #{gwgcn_forward.4}
  #allocation0 [shape = 'u32[]', space=smem, size = 0x4, offset = 0x4, fixed_abs, tag = 'smem constant byte address 0x4 - core index']
  #allocation1 [shape = 'u32[144,128]{1,0:T(1,128)}', space=vmem, size = 0x12000, scoped, tag = 'internal scratch']
  %s0 = inlined_call_operand.vmem [shape: bf16[128,128], index: 0, kind: input, shape index: {}]
  %s1 = inlined_call_operand.vmem [shape: bf16[128,128], index: 1, kind: input, shape index: {}]
  %s2 = inlined_call_operand.vmem [shape: bf16[128,128], index: 2, kind: output, shape index: {}]
  %s3 = sld [smem:[#allocation0]]
  $region18: #{gwgcn_forward.4} parent=0
    _
  %s5 = ssub.s32 1, %s3
  %s6 = scalar_select 0, %s5, %s3
  // Predicated region
  $region2: #{gwgcn_forward.4} parent=0 // pred_check
    _
  $region3: #{gwgcn_forward.4} parent=0 // pred_check_branch
    %8 = sbr.rel (0) target = $region5
  $region4: #{gwgcn_forward.4} parent=0 // pred_region
    _
  $region5: #{gwgcn_forward.4} parent=0 // pred_fallthru
    _
  // Predicated region
  $region6: #{gwgcn_forward.4} parent=0 // pred_check
    _
  $region7: #{gwgcn_forward.4} parent=0 // pred_check_branch
    %10 = sbr.rel (0) target = $region9
  $region8: #{gwgcn_forward.4} parent=0 // pred_region
    _
  $region9: #{gwgcn_forward.4} parent=0 // pred_fallthru
    _
  %v11 = vld [vmem:[%s0] sm:$0xf]
  %v12 = vld [vmem:[%s0 + $0x4] sm:$0xf]
  %v13 = vld [vmem:[%s0 + $0x8] sm:$0xf]
  %v14 = vld [vmem:[%s0 + $0xc] sm:$0xf]
  %v15 = vld [vmem:[%s0 + $0x10] sm:$0xf]
  %v16 = vld [vmem:[%s0 + $0x14] sm:$0xf]
  %v17 = vld [vmem:[%s0 + $0x18] sm:$0xf]
  %v18 = vld [vmem:[%s0 + $0x1c] sm:$0xf]
  %v19 = vld [vmem:[%s0 + $0x20] sm:$0xf]
  %v20 = vld [vmem:[%s0 + $0x24] sm:$0xf]
  %v21 = vld [vmem:[%s0 + $0x28] sm:$0xf]
  %v22 = vld [vmem:[%s0 + $0x2c] sm:$0xf]
  %v23 = vld [vmem:[%s0 + $0x30] sm:$0xf]
  %v24 = vld [vmem:[%s0 + $0x34] sm:$0xf]
  %v25 = vld [vmem:[%s0 + $0x38] sm:$0xf]
  %v26 = vld [vmem:[%s0 + $0x3c] sm:$0xf]
  %v27 = vld [vmem:[%s1] sm:$0xf]
  %v28 = vld [vmem:[%s1 + $0x4] sm:$0xf]
  %v29 = vld [vmem:[%s1 + $0x8] sm:$0xf]
  %v30 = vld [vmem:[%s1 + $0xc] sm:$0xf]
  %v31 = vld [vmem:[%s1 + $0x10] sm:$0xf]
  %v32 = vld [vmem:[%s1 + $0x14] sm:$0xf]
  %v33 = vld [vmem:[%s1 + $0x18] sm:$0xf]
  %v34 = vld [vmem:[%s1 + $0x1c] sm:$0xf]
  %v35 = vld [vmem:[%s1 + $0x20] sm:$0xf]
  %v36 = vld [vmem:[%s1 + $0x24] sm:$0xf]
  %v37 = vld [vmem:[%s1 + $0x28] sm:$0xf]
  %v38 = vld [vmem:[%s1 + $0x2c] sm:$0xf]
  %v39 = vld [vmem:[%s1 + $0x30] sm:$0xf]
  %v40 = vld [vmem:[%s1 + $0x34] sm:$0xf]
  %v41 = vld [vmem:[%s1 + $0x38] sm:$0xf]
  %v42 = vld [vmem:[%s1 + $0x3c] sm:$0xf]
  %v43 = vmul.bf16 %v11, %v27
  %v44 = vmul.bf16 %v12, %v28
  %v45 = vmul.bf16 %v13, %v29
  %v46 = vmul.bf16 %v14, %v30
  %v47 = vmul.bf16 %v15, %v31
  %v48 = vmul.bf16 %v16, %v32
  %v49 = vmul.bf16 %v17, %v33
  %v50 = vmul.bf16 %v18, %v34
  %v51 = vmul.bf16 %v19, %v35
  %v52 = vmul.bf16 %v20, %v36
  %v53 = vmul.bf16 %v21, %v37
  %v54 = vmul.bf16 %v22, %v38
  %v55 = vmul.bf16 %v23, %v39
  %v56 = vmul.bf16 %v24, %v40
  %v57 = vmul.bf16 %v25, %v41
  %v58 = vmul.bf16 %v26, %v42
  %59 = vst [vmem:[%s2] sm:$0xf] %v43
  %60 = vst [vmem:[%s2 + $0x4] sm:$0xf] %v44
  %61 = vst [vmem:[%s2 + $0x8] sm:$0xf] %v45
  %62 = vst [vmem:[%s2 + $0xc] sm:$0xf] %v46
  %63 = vst [vmem:[%s2 + $0x10] sm:$0xf] %v47
  %64 = vst [vmem:[%s2 + $0x14] sm:$0xf] %v48
  %65 = vst [vmem:[%s2 + $0x18] sm:$0xf] %v49
  %66 = vst [vmem:[%s2 + $0x1c] sm:$0xf] %v50
  %67 = vst [vmem:[%s2 + $0x20] sm:$0xf] %v51
  %68 = vst [vmem:[%s2 + $0x24] sm:$0xf] %v52
  %69 = vst [vmem:[%s2 + $0x28] sm:$0xf] %v53
  %70 = vst [vmem:[%s2 + $0x2c] sm:$0xf] %v54
  %71 = vst [vmem:[%s2 + $0x30] sm:$0xf] %v55
  %72 = vst [vmem:[%s2 + $0x34] sm:$0xf] %v56
  %73 = vst [vmem:[%s2 + $0x38] sm:$0xf] %v57
  %74 = vst [vmem:[%s2 + $0x3c] sm:$0xf] %v58
  // Predicated region
  $region10: #{gwgcn_forward.4} parent=0 // pred_check
    _
  $region11: #{gwgcn_forward.4} parent=0 // pred_check_branch
    %76 = sbr.rel (0) target = $region13
  $region12: #{gwgcn_forward.4} parent=0 // pred_region
    _
  $region13: #{gwgcn_forward.4} parent=0 // pred_fallthru
    _
  // Predicated region
  $region14: #{gwgcn_forward.4} parent=0 // pred_check
    _
  $region15: #{gwgcn_forward.4} parent=0 // pred_check_branch
    %78 = sbr.rel (0) target = $region17
  $region16: #{gwgcn_forward.4} parent=0 // pred_region
    _
  $region17: #{gwgcn_forward.4} parent=0 // pred_fallthru
    _

// kernel: gwgcn_forward.7
$region0: #{gwgcn_forward.7}
  #allocation0 [shape = 'u32[]', space=smem, size = 0x4, offset = 0x4, fixed_abs, tag = 'smem constant byte address 0x4 - core index']
  #allocation1 [shape = 'u32[144,128]{1,0:T(1,128)}', space=vmem, size = 0x12000, scoped, tag = 'internal scratch']
  #allocation2 [shape = 'f32[128,128]{1,0:T(8,128)}', space=vmem, size = 0x10000, scoped, tag = 'scratch operand']
  %s0 = inlined_call_operand.vmem [shape: bf16[128,128], index: 0, kind: input, shape index: {}]
  %s1 = inlined_call_operand.vmem [shape: bf16[128,128], index: 1, kind: input, shape index: {}]
  %s2 = inlined_call_operand.vmem [shape: f32[128,128], index: 2, kind: input, shape index: {}]
  %s3 = inlined_call_operand.vmem [shape: f32[1,128], index: 3, kind: input, shape index: {}]
  %s4 = inlined_call_operand.vmem [shape: f32[128,128], index: 4, kind: output, shape index: {}]
  %s5 = sld [smem:[#allocation0]]
  $region34: #{gwgcn_forward.7} parent=0
    _
  %s7 = ssub.s32 1, %s5
  %s8 = scalar_select 0, %s7, %s5
  // Predicated region
  $region2: #{gwgcn_forward.7} parent=0 // pred_check
    _
  $region3: #{gwgcn_forward.7} parent=0 // pred_check_branch
    %10 = sbr.rel (0) target = $region5
  $region4: #{gwgcn_forward.7} parent=0 // pred_region
    _
  $region5: #{gwgcn_forward.7} parent=0 // pred_fallthru
    _
  // Predicated region
  $region6: #{gwgcn_forward.7} parent=0 // pred_check
    _
  $region7: #{gwgcn_forward.7} parent=0 // pred_check_branch
    %12 = sbr.rel (0) target = $region9
  $region8: #{gwgcn_forward.7} parent=0 // pred_region
    _
  $region9: #{gwgcn_forward.7} parent=0 // pred_fallthru
    _
  // Predicated region
  $region10: #{gwgcn_forward.7} parent=0 // pred_check
    _
  $region11: #{gwgcn_forward.7} parent=0 // pred_check_branch
    %14 = sbr.rel (0) target = $region13
  $region12: #{gwgcn_forward.7} parent=0 // pred_region
    _
  $region13: #{gwgcn_forward.7} parent=0 // pred_fallthru
    _
  // Predicated region
  $region14: #{gwgcn_forward.7} parent=0 // pred_check
    _
  $region15: #{gwgcn_forward.7} parent=0 // pred_check_branch
    %16 = sbr.rel (0) target = $region17
  $region16: #{gwgcn_forward.7} parent=0 // pred_region
    _
  $region17: #{gwgcn_forward.7} parent=0 // pred_fallthru
    _
  %p18 = scmp.eq.s32.totalorder 0, 0
  // Predicated region
  $region18: #{gwgcn_forward.7} parent=0 // pred_check
    %p19 = pneg %p18
  $region19: #{gwgcn_forward.7} parent=0 // pred_check_branch
    %21 = sbr.rel (%p19) target = $region21
  $region20: #{gwgcn_forward.7} parent=0 // pred_region
    %22 = vst [vmem:[#allocation2] sm:$0xff] 0.0
    %23 = vst [vmem:[#allocation2 + $0x8] sm:$0xff] 0.0
    %24 = vst [vmem:[#allocation2 + $0x10] sm:$0xff] 0.0
    %25 = vst [vmem:[#allocation2 + $0x18] sm:$0xff] 0.0
    %26 = vst [vmem:[#allocation2 + $0x20] sm:$0xff] 0.0
    %27 = vst [vmem:[#allocation2 + $0x28] sm:$0xff] 0.0
    %28 = vst [vmem:[#allocation2 + $0x30] sm:$0xff] 0.0
    %29 = vst [vmem:[#allocation2 + $0x38] sm:$0xff] 0.0
    %30 = vst [vmem:[#allocation2 + $0x40] sm:$0xff] 0.0
    %31 = vst [vmem:[#allocation2 + $0x48] sm:$0xff] 0.0
    %32 = vst [vmem:[#allocation2 + $0x50] sm:$0xff] 0.0
    %33 = vst [vmem:[#allocation2 + $0x58] sm:$0xff] 0.0
    %34 = vst [vmem:[#allocation2 + $0x60] sm:$0xff] 0.0
    %35 = vst [vmem:[#allocation2 + $0x68] sm:$0xff] 0.0
    %36 = vst [vmem:[#allocation2 + $0x70] sm:$0xff] 0.0
    %37 = vst [vmem:[#allocation2 + $0x78] sm:$0xff] 0.0
  $region21: #{gwgcn_forward.7} parent=0 // pred_fallthru
    _
  %s38 = smul.u32 0, 128
  %s39 = sshra.s32 %s38, 3
  %s40 = sand.u32 %s38, 7
  %s41 = smul.addr %s39, 4
  %s42 = scalar_lea.vmem %s0, %s41
  %v43 = vld [vmem:[%s42] sm:$0xf]
  %v44 = vld [vmem:[%s42 + $0x4] sm:$0xf]
  %v45 = vld [vmem:[%s42 + $0x8] sm:$0xf]
  %v46 = vld [vmem:[%s42 + $0xc] sm:$0xf]
  %v47 = vld [vmem:[%s42 + $0x10] sm:$0xf]
  %v48 = vld [vmem:[%s42 + $0x14] sm:$0xf]
  %v49 = vld [vmem:[%s42 + $0x18] sm:$0xf]
  %v50 = vld [vmem:[%s42 + $0x1c] sm:$0xf]
  %v51 = vld [vmem:[%s42 + $0x20] sm:$0xf]
  %v52 = vld [vmem:[%s42 + $0x24] sm:$0xf]
  %v53 = vld [vmem:[%s42 + $0x28] sm:$0xf]
  %v54 = vld [vmem:[%s42 + $0x2c] sm:$0xf]
  %v55 = vld [vmem:[%s42 + $0x30] sm:$0xf]
  %v56 = vld [vmem:[%s42 + $0x34] sm:$0xf]
  %v57 = vld [vmem:[%s42 + $0x38] sm:$0xf]
  %v58 = vld [vmem:[%s42 + $0x3c] sm:$0xf]
  %v59 = vld [vmem:[#allocation2] sm:$0xff]
  %v60 = vld [vmem:[#allocation2 + $0x8] sm:$0xff]
  %v61 = vld [vmem:[#allocation2 + $0x10] sm:$0xff]
  %v62 = vld [vmem:[#allocation2 + $0x18] sm:$0xff]
  %v63 = vld [vmem:[#allocation2 + $0x20] sm:$0xff]
  %v64 = vld [vmem:[#allocation2 + $0x28] sm:$0xff]
  %v65 = vld [vmem:[#allocation2 + $0x30] sm:$0xff]
  %v66 = vld [vmem:[#allocation2 + $0x38] sm:$0xff]
  %v67 = vld [vmem:[#allocation2 + $0x40] sm:$0xff]
  %v68 = vld [vmem:[#allocation2 + $0x48] sm:$0xff]
  %v69 = vld [vmem:[#allocation2 + $0x50] sm:$0xff]
  %v70 = vld [vmem:[#allocation2 + $0x58] sm:$0xff]
  %v71 = vld [vmem:[#allocation2 + $0x60] sm:$0xff]
  %v72 = vld [vmem:[#allocation2 + $0x68] sm:$0xff]
  %v73 = vld [vmem:[#allocation2 + $0x70] sm:$0xff]
  %v74 = vld [vmem:[#allocation2 + $0x78] sm:$0xff]
  %v75 = vld [vmem:[%s1] sm:$0xf]
  %v76 = vld [vmem:[%s1 + $0x4] sm:$0xf]
  %v77 = vld [vmem:[%s1 + $0x8] sm:$0xf]
  %v78 = vld [vmem:[%s1 + $0xc] sm:$0xf]
  %v79 = vld [vmem:[%s1 + $0x10] sm:$0xf]
  %v80 = vld [vmem:[%s1 + $0x14] sm:$0xf]
  %v81 = vld [vmem:[%s1 + $0x18] sm:$0xf]
  %v82 = vld [vmem:[%s1 + $0x1c] sm:$0xf]
  %v83 = vld [vmem:[%s1 + $0x20] sm:$0xf]
  %v84 = vld [vmem:[%s1 + $0x24] sm:$0xf]
  %v85 = vld [vmem:[%s1 + $0x28] sm:$0xf]
  %v86 = vld [vmem:[%s1 + $0x2c] sm:$0xf]
  %v87 = vld [vmem:[%s1 + $0x30] sm:$0xf]
  %v88 = vld [vmem:[%s1 + $0x34] sm:$0xf]
  %v89 = vld [vmem:[%s1 + $0x38] sm:$0xf]
  %v90 = vld [vmem:[%s1 + $0x3c] sm:$0xf]
  %v107 = vunpack.c.l.b16 %v75
  %v108 = vunpack.c.l.b16 %v76
  %v109 = vunpack.c.l.b16 %v77
  %v110 = vunpack.c.l.b16 %v78
  %v111 = vunpack.c.l.b16 %v79
  %v112 = vunpack.c.l.b16 %v80
  %v113 = vunpack.c.l.b16 %v81
  %v114 = vunpack.c.l.b16 %v82
  %v115 = vunpack.c.l.b16 %v83
  %v116 = vunpack.c.l.b16 %v84
  %v117 = vunpack.c.l.b16 %v85
  %v118 = vunpack.c.l.b16 %v86
  %v119 = vunpack.c.l.b16 %v87
  %v120 = vunpack.c.l.b16 %v88
  %v121 = vunpack.c.l.b16 %v89
  %v122 = vunpack.c.l.b16 %v90
  %v123 = vpack.c.b16 %v108, %v107
  %v124 = vpack.c.b16 %v110, %v109
  %v125 = vpack.c.b16 %v112, %v111
  %v126 = vpack.c.b16 %v114, %v113
  %v127 = vpack.c.b16 %v116, %v115
  %v128 = vpack.c.b16 %v118, %v117
  %v129 = vpack.c.b16 %v120, %v119
  %v130 = vpack.c.b16 %v122, %v121
  %v155 = vunpack.c.l.b16 %v43
  %v156 = vunpack.c.l.b16 %v44
  %v157 = vunpack.c.l.b16 %v45
  %v158 = vunpack.c.l.b16 %v46
  %v159 = vunpack.c.l.b16 %v47
  %v160 = vunpack.c.l.b16 %v48
  %v161 = vunpack.c.l.b16 %v49
  %v162 = vunpack.c.l.b16 %v50
  %v163 = vunpack.c.l.b16 %v51
  %v164 = vunpack.c.l.b16 %v52
  %v165 = vunpack.c.l.b16 %v53
  %v166 = vunpack.c.l.b16 %v54
  %v167 = vunpack.c.l.b16 %v55
  %v168 = vunpack.c.l.b16 %v56
  %v169 = vunpack.c.l.b16 %v57
  %v170 = vunpack.c.l.b16 %v58
  %v171 = vpack.c.b16 %v156, %v155
  %v172 = vpack.c.b16 %v158, %v157
  %v173 = vpack.c.b16 %v160, %v159
  %v174 = vpack.c.b16 %v162, %v161
  %v175 = vpack.c.b16 %v164, %v163
  %v176 = vpack.c.b16 %v166, %v165
  %v177 = vpack.c.b16 %v168, %v167
  %v178 = vpack.c.b16 %v170, %v169
  %187 = vmatprep.subr.bf16.mxu0 0
  %188 = vmatpush1.bf16.msra.mxu0 %v171
  %189 = vmatprep.subr.bf16.mxu0 0
  %190 = vmatpush1.bf16.msra.mxu0 %v172
  %191 = vmatprep.subr.bf16.mxu0 0
  %192 = vmatpush1.bf16.msra.mxu0 %v173
  %193 = vmatprep.subr.bf16.mxu0 0
  %194 = vmatpush1.bf16.msra.mxu0 %v174
  %195 = vmatprep.subr.bf16.mxu0 0
  %196 = vmatpush1.bf16.msra.mxu0 %v175
  %197 = vmatprep.subr.bf16.mxu0 0
  %198 = vmatpush1.bf16.msra.mxu0 %v176
  %199 = vmatprep.subr.bf16.mxu0 0
  %200 = vmatpush1.bf16.msra.mxu0 %v177
  %201 = vmatprep.subr.bf16.mxu0 0
  %202 = vmatpush1.bf16.msra.mxu0 %v178
  %203 = vmatprep.subr.bf16.mxu0 0
  %204 = vmatpush1.bf16.msra.mxu0 0
  %205 = vmatprep.subr.bf16.mxu0 0
  %206 = vmatpush1.bf16.msra.mxu0 0
  %207 = vmatprep.subr.bf16.mxu0 0
  %208 = vmatpush1.bf16.msra.mxu0 0
  %209 = vmatprep.subr.bf16.mxu0 0
  %210 = vmatpush1.bf16.msra.mxu0 0
  %211 = vmatprep.subr.bf16.mxu0 0
  %212 = vmatpush1.bf16.msra.mxu0 0
  %213 = vmatprep.subr.bf16.mxu0 0
  %214 = vmatpush1.bf16.msra.mxu0 0
  %215 = vmatprep.subr.bf16.mxu0 0
  %216 = vmatpush1.bf16.msra.mxu0 0
  %217 = vmatprep.subr.bf16.mxu0 0
  %218 = vmatpush1.bf16.msra.mxu0 0
  %219 = vmatprep.mubr.bf16.mxu0 0
  %220 = vmatmul.mubr.bf16.gmra.mrb[0].mxu0 %v123
  %v221 = vpop.f32.mrb[0].mxu0
  %v222 = vadd.f32 0.0, %v221
  %v223 = vpop.f32.mrb[0].mxu0
  %v224 = vpop.f32.mrb[0].mxu0
  %v225 = vadd.f32 0.0, %v224
  %v226 = vpop.f32.mrb[0].mxu0
  %227 = vmatprep.mubr.bf16.mxu0 0
  %228 = vmatmul.mubr.bf16.gmra.mrb[0].mxu0 %v124
  %v229 = vpop.f32.mrb[0].mxu0
  %v230 = vadd.f32 0.0, %v229
  %v231 = vpop.f32.mrb[0].mxu0
  %v232 = vpop.f32.mrb[0].mxu0
  %v233 = vadd.f32 0.0, %v232
  %v234 = vpop.f32.mrb[0].mxu0
  %235 = vmatprep.mubr.bf16.mxu0 0
  %236 = vmatmul.mubr.bf16.gmra.mrb[0].mxu0 %v125
  %v237 = vpop.f32.mrb[0].mxu0
  %v238 = vadd.f32 0.0, %v237
  %v239 = vpop.f32.mrb[0].mxu0
  %v240 = vpop.f32.mrb[0].mxu0
  %v241 = vadd.f32 0.0, %v240
  %v242 = vpop.f32.mrb[0].mxu0
  %243 = vmatprep.mubr.bf16.mxu0 0
  %244 = vmatmul.mubr.bf16.gmra.mrb[0].mxu0 %v126
  %v245 = vpop.f32.mrb[0].mxu0
  %v246 = vadd.f32 0.0, %v245
  %v247 = vpop.f32.mrb[0].mxu0
  %v248 = vpop.f32.mrb[0].mxu0
  %v249 = vadd.f32 0.0, %v248
  %v250 = vpop.f32.mrb[0].mxu0
  %251 = vmatprep.mubr.bf16.mxu0 0
  %252 = vmatmul.mubr.bf16.gmra.mrb[0].mxu0 %v127
  %v253 = vpop.f32.mrb[0].mxu0
  %v254 = vadd.f32 0.0, %v253
  %v255 = vpop.f32.mrb[0].mxu0
  %v256 = vpop.f32.mrb[0].mxu0
  %v257 = vadd.f32 0.0, %v256
  %v258 = vpop.f32.mrb[0].mxu0
  %259 = vmatprep.mubr.bf16.mxu0 0
  %260 = vmatmul.mubr.bf16.gmra.mrb[0].mxu0 %v128
  %v261 = vpop.f32.mrb[0].mxu0
  %v262 = vadd.f32 0.0, %v261
  %v263 = vpop.f32.mrb[0].mxu0
  %v264 = vpop.f32.mrb[0].mxu0
  %v265 = vadd.f32 0.0, %v264
  %v266 = vpop.f32.mrb[0].mxu0
  %267 = vmatprep.mubr.bf16.mxu0 0
  %268 = vmatmul.mubr.bf16.gmra.mrb[0].mxu0 %v129
  %v269 = vpop.f32.mrb[0].mxu0
  %v270 = vadd.f32 0.0, %v269
  %v271 = vpop.f32.mrb[0].mxu0
  %v272 = vpop.f32.mrb[0].mxu0
  %v273 = vadd.f32 0.0, %v272
  %v274 = vpop.f32.mrb[0].mxu0
  %275 = vmatprep.mubr.bf16.mxu0 0
  %276 = vmatmul.mubr.bf16.gmra.mrb[0].mxu0 %v130
  %v277 = vpop.f32.mrb[0].mxu0
  %v278 = vadd.f32 0.0, %v277
  %v279 = vpop.f32.mrb[0].mxu0
  %v280 = vpop.f32.mrb[0].mxu0
  %v281 = vadd.f32 0.0, %v280
  %v282 = vpop.f32.mrb[0].mxu0
  %283 = vdwg.mxu0
  %v284 = vadd.f32 %v59, %v222
  %v285 = vadd.f32 %v60, %v225
  %v286 = vadd.f32 %v61, %v230
  %v287 = vadd.f32 %v62, %v233
  %v288 = vadd.f32 %v63, %v238
  %v289 = vadd.f32 %v64, %v241
  %v290 = vadd.f32 %v65, %v246
  %v291 = vadd.f32 %v66, %v249
  %v292 = vadd.f32 %v67, %v254
  %v293 = vadd.f32 %v68, %v257
  %v294 = vadd.f32 %v69, %v262
  %v295 = vadd.f32 %v70, %v265
  %v296 = vadd.f32 %v71, %v270
  %v297 = vadd.f32 %v72, %v273
  %v298 = vadd.f32 %v73, %v278
  %v299 = vadd.f32 %v74, %v281
  %300 = vst [vmem:[#allocation2] sm:$0xff] %v284
  %301 = vst [vmem:[#allocation2 + $0x8] sm:$0xff] %v285
  %302 = vst [vmem:[#allocation2 + $0x10] sm:$0xff] %v286
  %303 = vst [vmem:[#allocation2 + $0x18] sm:$0xff] %v287
  %304 = vst [vmem:[#allocation2 + $0x20] sm:$0xff] %v288
  %305 = vst [vmem:[#allocation2 + $0x28] sm:$0xff] %v289
  %306 = vst [vmem:[#allocation2 + $0x30] sm:$0xff] %v290
  %307 = vst [vmem:[#allocation2 + $0x38] sm:$0xff] %v291
  %308 = vst [vmem:[#allocation2 + $0x40] sm:$0xff] %v292
  %309 = vst [vmem:[#allocation2 + $0x48] sm:$0xff] %v293
  %310 = vst [vmem:[#allocation2 + $0x50] sm:$0xff] %v294
  %311 = vst [vmem:[#allocation2 + $0x58] sm:$0xff] %v295
  %312 = vst [vmem:[#allocation2 + $0x60] sm:$0xff] %v296
  %313 = vst [vmem:[#allocation2 + $0x68] sm:$0xff] %v297
  %314 = vst [vmem:[#allocation2 + $0x70] sm:$0xff] %v298
  %315 = vst [vmem:[#allocation2 + $0x78] sm:$0xff] %v299
  // Predicated region
  $region22: #{gwgcn_forward.7} parent=0 // pred_check
    %p316 = pneg %p18
  $region23: #{gwgcn_forward.7} parent=0 // pred_check_branch
    %318 = sbr.rel (%p316) target = $region25
  $region24: #{gwgcn_forward.7} parent=0 // pred_region
    %v319 = vld [vmem:[#allocation2] sm:$0xff]
    %v320 = vld [vmem:[#allocation2 + $0x8] sm:$0xff]
    %v321 = vld [vmem:[#allocation2 + $0x10] sm:$0xff]
    %v322 = vld [vmem:[#allocation2 + $0x18] sm:$0xff]
    %v323 = vld [vmem:[#allocation2 + $0x20] sm:$0xff]
    %v324 = vld [vmem:[#allocation2 + $0x28] sm:$0xff]
    %v325 = vld [vmem:[#allocation2 + $0x30] sm:$0xff]
    %v326 = vld [vmem:[#allocation2 + $0x38] sm:$0xff]
    %v327 = vld [vmem:[#allocation2 + $0x40] sm:$0xff]
    %v328 = vld [vmem:[#allocation2 + $0x48] sm:$0xff]
    %v329 = vld [vmem:[#allocation2 + $0x50] sm:$0xff]
    %v330 = vld [vmem:[#allocation2 + $0x58] sm:$0xff]
    %v331 = vld [vmem:[#allocation2 + $0x60] sm:$0xff]
    %v332 = vld [vmem:[#allocation2 + $0x68] sm:$0xff]
    %v333 = vld [vmem:[#allocation2 + $0x70] sm:$0xff]
    %v334 = vld [vmem:[#allocation2 + $0x78] sm:$0xff]
    %v335 = vld [vmem:[%s2] sm:$0xff]
    %v336 = vld [vmem:[%s2 + $0x8] sm:$0xff]
    %v337 = vld [vmem:[%s2 + $0x10] sm:$0xff]
    %v338 = vld [vmem:[%s2 + $0x18] sm:$0xff]
    %v339 = vld [vmem:[%s2 + $0x20] sm:$0xff]
    %v340 = vld [vmem:[%s2 + $0x28] sm:$0xff]
    %v341 = vld [vmem:[%s2 + $0x30] sm:$0xff]
    %v342 = vld [vmem:[%s2 + $0x38] sm:$0xff]
    %v343 = vld [vmem:[%s2 + $0x40] sm:$0xff]
    %v344 = vld [vmem:[%s2 + $0x48] sm:$0xff]
    %v345 = vld [vmem:[%s2 + $0x50] sm:$0xff]
    %v346 = vld [vmem:[%s2 + $0x58] sm:$0xff]
    %v347 = vld [vmem:[%s2 + $0x60] sm:$0xff]
    %v348 = vld [vmem:[%s2 + $0x68] sm:$0xff]
    %v349 = vld [vmem:[%s2 + $0x70] sm:$0xff]
    %v350 = vld [vmem:[%s2 + $0x78] sm:$0xff]
    %v351 = vld [vmem:[%s3] sm:$0x1]
    %v353 = vlaneseq
    %v354 = vshrl.u32 %v353, 7
    %v355 = vsub.s32 0, %v354
    %v356 = vrot.slane %v351, %v355
    %358 = vmatprep.subr.mxu0 0.0
    %359 = vmatpush1.msra.mxu0 %v335
    %360 = vmatprep.subr.mxu0 0.0
    %361 = vmatpush1.msra.mxu0 %v336
    %362 = vmatprep.subr.mxu0 0.0
    %363 = vmatpush1.msra.mxu0 %v337
    %364 = vmatprep.subr.mxu0 0.0
    %365 = vmatpush1.msra.mxu0 %v338
    %366 = vmatprep.subr.mxu0 0.0
    %367 = vmatpush1.msra.mxu0 %v339
    %368 = vmatprep.subr.mxu0 0.0
    %369 = vmatpush1.msra.mxu0 %v340
    %370 = vmatprep.subr.mxu0 0.0
    %371 = vmatpush1.msra.mxu0 %v341
    %372 = vmatprep.subr.mxu0 0.0
    %373 = vmatpush1.msra.mxu0 %v342
    %374 = vmatprep.subr.mxu0 0.0
    %375 = vmatpush1.msra.mxu0 %v343
    %376 = vmatprep.subr.mxu0 0.0
    %377 = vmatpush1.msra.mxu0 %v344
    %378 = vmatprep.subr.mxu0 0.0
    %379 = vmatpush1.msra.mxu0 %v345
    %380 = vmatprep.subr.mxu0 0.0
    %381 = vmatpush1.msra.mxu0 %v346
    %382 = vmatprep.subr.mxu0 0.0
    %383 = vmatpush1.msra.mxu0 %v347
    %384 = vmatprep.subr.mxu0 0.0
    %385 = vmatpush1.msra.mxu0 %v348
    %386 = vmatprep.subr.mxu0 0.0
    %387 = vmatpush1.msra.mxu0 %v349
    %388 = vmatprep.subr.mxu0 0.0
    %389 = vmatpush1.msra.mxu0 %v350
    %390 = vmatprep.subr.mxu0 0.0
    %391 = vmatpush1.msra.mxu0 0.0
    %392 = vmatprep.subr.mxu0 0.0
    %393 = vmatpush1.msra.mxu0 0.0
    %394 = vmatprep.subr.mxu0 0.0
    %395 = vmatpush1.msra.mxu0 0.0
    %396 = vmatprep.subr.mxu0 0.0
    %397 = vmatpush1.msra.mxu0 0.0
    %398 = vmatprep.subr.mxu0 0.0
    %399 = vmatpush1.msra.mxu0 0.0
    %400 = vmatprep.subr.mxu0 0.0
    %401 = vmatpush1.msra.mxu0 0.0
    %402 = vmatprep.subr.mxu0 0.0
    %403 = vmatpush1.msra.mxu0 0.0
    %404 = vmatprep.subr.mxu0 0.0
    %405 = vmatpush1.msra.mxu0 0.0
    %406 = vmatprep.subr.mxu0 0.0
    %407 = vmatpush1.msra.mxu0 0.0
    %408 = vmatprep.subr.mxu0 0.0
    %409 = vmatpush1.msra.mxu0 0.0
    %410 = vmatprep.subr.mxu0 0.0
    %411 = vmatpush1.msra.mxu0 0.0
    %412 = vmatprep.subr.mxu0 0.0
    %413 = vmatpush1.msra.mxu0 0.0
    %414 = vmatprep.subr.mxu0 0.0
    %415 = vmatpush1.msra.mxu0 0.0
    %416 = vmatprep.subr.mxu0 0.0
    %417 = vmatpush1.msra.mxu0 0.0
    %418 = vmatprep.subr.mxu0 0.0
    %419 = vmatpush1.msra.mxu0 0.0
    %420 = vmatprep.subr.mxu0 0.0
    %421 = vmatpush1.msra.mxu0 0.0
    %422 = vmatprep.mubr.f32.mxu0 0.0
    %423 = vmatmul.mubr.f32.gmra.mrb[0].mxu0 %v319
    %v424 = vpop.f32.mrb[0].mxu0
    %v425 = vadd.f32 %v356, %v424
    %v426 = vpop.f32.mrb[0].mxu0
    %427 = vmatprep.mubr.f32.mxu0 0.0
    %428 = vmatmul.mubr.f32.gmra.mrb[0].mxu0 %v320
    %v429 = vpop.f32.mrb[0].mxu0
    %v430 = vadd.f32 %v356, %v429
    %v431 = vpop.f32.mrb[0].mxu0
    %432 = vmatprep.mubr.f32.mxu0 0.0
    %433 = vmatmul.mubr.f32.gmra.mrb[0].mxu0 %v321
    %v434 = vpop.f32.mrb[0].mxu0
    %v435 = vadd.f32 %v356, %v434
    %v436 = vpop.f32.mrb[0].mxu0
    %437 = vmatprep.mubr.f32.mxu0 0.0
    %438 = vmatmul.mubr.f32.gmra.mrb[0].mxu0 %v322
    %v439 = vpop.f32.mrb[0].mxu0
    %v440 = vadd.f32 %v356, %v439
    %v441 = vpop.f32.mrb[0].mxu0
    %442 = vmatprep.mubr.f32.mxu0 0.0
    %443 = vmatmul.mubr.f32.gmra.mrb[0].mxu0 %v323
    %v444 = vpop.f32.mrb[0].mxu0
    %v445 = vadd.f32 %v356, %v444
    %v446 = vpop.f32.mrb[0].mxu0
    %447 = vmatprep.mubr.f32.mxu0 0.0
    %448 = vmatmul.mubr.f32.gmra.mrb[0].mxu0 %v324
    %v449 = vpop.f32.mrb[0].mxu0
    %v450 = vadd.f32 %v356, %v449
    %v451 = vpop.f32.mrb[0].mxu0
    %452 = vmatprep.mubr.f32.mxu0 0.0
    %453 = vmatmul.mubr.f32.gmra.mrb[0].mxu0 %v325
    %v454 = vpop.f32.mrb[0].mxu0
    %v455 = vadd.f32 %v356, %v454
    %v456 = vpop.f32.mrb[0].mxu0
    %457 = vmatprep.mubr.f32.mxu0 0.0
    %458 = vmatmul.mubr.f32.gmra.mrb[0].mxu0 %v326
    %v459 = vpop.f32.mrb[0].mxu0
    %v460 = vadd.f32 %v356, %v459
    %v461 = vpop.f32.mrb[0].mxu0
    %462 = vmatprep.mubr.f32.mxu0 0.0
    %463 = vmatmul.mubr.f32.gmra.mrb[0].mxu0 %v327
    %v464 = vpop.f32.mrb[0].mxu0
    %v465 = vadd.f32 %v356, %v464
    %v466 = vpop.f32.mrb[0].mxu0
    %467 = vmatprep.mubr.f32.mxu0 0.0
    %468 = vmatmul.mubr.f32.gmra.mrb[0].mxu0 %v328
    %v469 = vpop.f32.mrb[0].mxu0
    %v470 = vadd.f32 %v356, %v469
    %v471 = vpop.f32.mrb[0].mxu0
    %472 = vmatprep.mubr.f32.mxu0 0.0
    %473 = vmatmul.mubr.f32.gmra.mrb[0].mxu0 %v329
    %v474 = vpop.f32.mrb[0].mxu0
    %v475 = vadd.f32 %v356, %v474
    %v476 = vpop.f32.mrb[0].mxu0
    %477 = vmatprep.mubr.f32.mxu0 0.0
    %478 = vmatmul.mubr.f32.gmra.mrb[0].mxu0 %v330
    %v479 = vpop.f32.mrb[0].mxu0
    %v480 = vadd.f32 %v356, %v479
    %v481 = vpop.f32.mrb[0].mxu0
    %482 = vmatprep.mubr.f32.mxu0 0.0
    %483 = vmatmul.mubr.f32.gmra.mrb[0].mxu0 %v331
    %v484 = vpop.f32.mrb[0].mxu0
    %v485 = vadd.f32 %v356, %v484
    %v486 = vpop.f32.mrb[0].mxu0
    %487 = vmatprep.mubr.f32.mxu0 0.0
    %488 = vmatmul.mubr.f32.gmra.mrb[0].mxu0 %v332
    %v489 = vpop.f32.mrb[0].mxu0
    %v490 = vadd.f32 %v356, %v489
    %v491 = vpop.f32.mrb[0].mxu0
    %492 = vmatprep.mubr.f32.mxu0 0.0
    %493 = vmatmul.mubr.f32.gmra.mrb[0].mxu0 %v333
    %v494 = vpop.f32.mrb[0].mxu0
    %v495 = vadd.f32 %v356, %v494
    %v496 = vpop.f32.mrb[0].mxu0
    %497 = vmatprep.mubr.f32.mxu0 0.0
    %498 = vmatmul.mubr.f32.gmra.mrb[0].mxu0 %v334
    %v499 = vpop.f32.mrb[0].mxu0
    %v500 = vadd.f32 %v356, %v499
    %v501 = vpop.f32.mrb[0].mxu0
    %502 = vdwg.mxu0
    %503 = vst [vmem:[%s4] sm:$0xff] %v425
    %504 = vst [vmem:[%s4 + $0x8] sm:$0xff] %v430
    %505 = vst [vmem:[%s4 + $0x10] sm:$0xff] %v435
    %506 = vst [vmem:[%s4 + $0x18] sm:$0xff] %v440
    %507 = vst [vmem:[%s4 + $0x20] sm:$0xff] %v445
    %508 = vst [vmem:[%s4 + $0x28] sm:$0xff] %v450
    %509 = vst [vmem:[%s4 + $0x30] sm:$0xff] %v455
    %510 = vst [vmem:[%s4 + $0x38] sm:$0xff] %v460
    %511 = vst [vmem:[%s4 + $0x40] sm:$0xff] %v465
    %512 = vst [vmem:[%s4 + $0x48] sm:$0xff] %v470
    %513 = vst [vmem:[%s4 + $0x50] sm:$0xff] %v475
    %514 = vst [vmem:[%s4 + $0x58] sm:$0xff] %v480
    %515 = vst [vmem:[%s4 + $0x60] sm:$0xff] %v485
    %516 = vst [vmem:[%s4 + $0x68] sm:$0xff] %v490
    %517 = vst [vmem:[%s4 + $0x70] sm:$0xff] %v495
    %518 = vst [vmem:[%s4 + $0x78] sm:$0xff] %v500
  $region25: #{gwgcn_forward.7} parent=0 // pred_fallthru
    _
  // Predicated region
  $region26: #{gwgcn_forward.7} parent=0 // pred_check
    _
  $region27: #{gwgcn_forward.7} parent=0 // pred_check_branch
    %520 = sbr.rel (0) target = $region29
  $region28: #{gwgcn_forward.7} parent=0 // pred_region
    _
  $region29: #{gwgcn_forward.7} parent=0 // pred_fallthru
    _
  // Predicated region
  $region30: #{gwgcn_forward.7} parent=0 // pred_check
    _
  $region31: #{gwgcn_forward.7} parent=0 // pred_check_branch
    %522 = sbr.rel (0) target = $region33
  $region32: #{gwgcn_forward.7} parent=0 // pred_region
    _
  $region33: #{gwgcn_forward.7} parent=0 // pred_fallthru
    _

// kernel: gwgcn_forward.5
$region0: #{gwgcn_forward.5}
  #allocation0 [shape = 'u32[]', space=smem, size = 0x4, offset = 0x4, fixed_abs, tag = 'smem constant byte address 0x4 - core index']
  #allocation1 [shape = 'u32[144,128]{1,0:T(1,128)}', space=vmem, size = 0x12000, scoped, tag = 'internal scratch']
  #allocation2 [shape = 'f32[128,128]{1,0:T(8,128)}', space=vmem, size = 0x10000, scoped, tag = 'scratch operand']
  %s0 = inlined_call_operand.vmem [shape: bf16[128,128], index: 0, kind: input, shape index: {}]
  %s1 = inlined_call_operand.vmem [shape: bf16[128,128], index: 1, kind: input, shape index: {}]
  %s2 = inlined_call_operand.vmem [shape: f32[128,128], index: 2, kind: input, shape index: {}]
  %s3 = inlined_call_operand.vmem [shape: f32[1,128], index: 3, kind: input, shape index: {}]
  %s4 = inlined_call_operand.vmem [shape: bf16[128,128], index: 4, kind: output, shape index: {}]
  %s5 = sld [smem:[#allocation0]]
  $region34: #{gwgcn_forward.5} parent=0
    _
  %s7 = ssub.s32 1, %s5
  %s8 = scalar_select 0, %s7, %s5
  // Predicated region
  $region2: #{gwgcn_forward.5} parent=0 // pred_check
    _
  $region3: #{gwgcn_forward.5} parent=0 // pred_check_branch
    %10 = sbr.rel (0) target = $region5
  $region4: #{gwgcn_forward.5} parent=0 // pred_region
    _
  $region5: #{gwgcn_forward.5} parent=0 // pred_fallthru
    _
  // Predicated region
  $region6: #{gwgcn_forward.5} parent=0 // pred_check
    _
  $region7: #{gwgcn_forward.5} parent=0 // pred_check_branch
    %12 = sbr.rel (0) target = $region9
  $region8: #{gwgcn_forward.5} parent=0 // pred_region
    _
  $region9: #{gwgcn_forward.5} parent=0 // pred_fallthru
    _
  // Predicated region
  $region10: #{gwgcn_forward.5} parent=0 // pred_check
    _
  $region11: #{gwgcn_forward.5} parent=0 // pred_check_branch
    %14 = sbr.rel (0) target = $region13
  $region12: #{gwgcn_forward.5} parent=0 // pred_region
    _
  $region13: #{gwgcn_forward.5} parent=0 // pred_fallthru
    _
  // Predicated region
  $region14: #{gwgcn_forward.5} parent=0 // pred_check
    _
  $region15: #{gwgcn_forward.5} parent=0 // pred_check_branch
    %16 = sbr.rel (0) target = $region17
  $region16: #{gwgcn_forward.5} parent=0 // pred_region
    _
  $region17: #{gwgcn_forward.5} parent=0 // pred_fallthru
    _
  %p18 = scmp.eq.s32.totalorder 0, 0
  // Predicated region
  $region18: #{gwgcn_forward.5} parent=0 // pred_check
    %p19 = pneg %p18
  $region19: #{gwgcn_forward.5} parent=0 // pred_check_branch
    %21 = sbr.rel (%p19) target = $region21
  $region20: #{gwgcn_forward.5} parent=0 // pred_region
    %22 = vst [vmem:[#allocation2] sm:$0xff] 0.0
    %23 = vst [vmem:[#allocation2 + $0x8] sm:$0xff] 0.0
    %24 = vst [vmem:[#allocation2 + $0x10] sm:$0xff] 0.0
    %25 = vst [vmem:[#allocation2 + $0x18] sm:$0xff] 0.0
    %26 = vst [vmem:[#allocation2 + $0x20] sm:$0xff] 0.0
    %27 = vst [vmem:[#allocation2 + $0x28] sm:$0xff] 0.0
    %28 = vst [vmem:[#allocation2 + $0x30] sm:$0xff] 0.0
    %29 = vst [vmem:[#allocation2 + $0x38] sm:$0xff] 0.0
    %30 = vst [vmem:[#allocation2 + $0x40] sm:$0xff] 0.0
    %31 = vst [vmem:[#allocation2 + $0x48] sm:$0xff] 0.0
    %32 = vst [vmem:[#allocation2 + $0x50] sm:$0xff] 0.0
    %33 = vst [vmem:[#allocation2 + $0x58] sm:$0xff] 0.0
    %34 = vst [vmem:[#allocation2 + $0x60] sm:$0xff] 0.0
    %35 = vst [vmem:[#allocation2 + $0x68] sm:$0xff] 0.0
    %36 = vst [vmem:[#allocation2 + $0x70] sm:$0xff] 0.0
    %37 = vst [vmem:[#allocation2 + $0x78] sm:$0xff] 0.0
  $region21: #{gwgcn_forward.5} parent=0 // pred_fallthru
    _
  %s38 = smul.u32 0, 128
  %s39 = sshra.s32 %s38, 3
  %s40 = sand.u32 %s38, 7
  %s41 = smul.addr %s39, 4
  %s42 = scalar_lea.vmem %s0, %s41
  %v43 = vld [vmem:[%s42] sm:$0xf]
  %v44 = vld [vmem:[%s42 + $0x4] sm:$0xf]
  %v45 = vld [vmem:[%s42 + $0x8] sm:$0xf]
  %v46 = vld [vmem:[%s42 + $0xc] sm:$0xf]
  %v47 = vld [vmem:[%s42 + $0x10] sm:$0xf]
  %v48 = vld [vmem:[%s42 + $0x14] sm:$0xf]
  %v49 = vld [vmem:[%s42 + $0x18] sm:$0xf]
  %v50 = vld [vmem:[%s42 + $0x1c] sm:$0xf]
  %v51 = vld [vmem:[%s42 + $0x20] sm:$0xf]
  %v52 = vld [vmem:[%s42 + $0x24] sm:$0xf]
  %v53 = vld [vmem:[%s42 + $0x28] sm:$0xf]
  %v54 = vld [vmem:[%s42 + $0x2c] sm:$0xf]
  %v55 = vld [vmem:[%s42 + $0x30] sm:$0xf]
  %v56 = vld [vmem:[%s42 + $0x34] sm:$0xf]
  %v57 = vld [vmem:[%s42 + $0x38] sm:$0xf]
  %v58 = vld [vmem:[%s42 + $0x3c] sm:$0xf]
  %v59 = vld [vmem:[#allocation2] sm:$0xff]
  %v60 = vld [vmem:[#allocation2 + $0x8] sm:$0xff]
  %v61 = vld [vmem:[#allocation2 + $0x10] sm:$0xff]
  %v62 = vld [vmem:[#allocation2 + $0x18] sm:$0xff]
  %v63 = vld [vmem:[#allocation2 + $0x20] sm:$0xff]
  %v64 = vld [vmem:[#allocation2 + $0x28] sm:$0xff]
  %v65 = vld [vmem:[#allocation2 + $0x30] sm:$0xff]
  %v66 = vld [vmem:[#allocation2 + $0x38] sm:$0xff]
  %v67 = vld [vmem:[#allocation2 + $0x40] sm:$0xff]
  %v68 = vld [vmem:[#allocation2 + $0x48] sm:$0xff]
  %v69 = vld [vmem:[#allocation2 + $0x50] sm:$0xff]
  %v70 = vld [vmem:[#allocation2 + $0x58] sm:$0xff]
  %v71 = vld [vmem:[#allocation2 + $0x60] sm:$0xff]
  %v72 = vld [vmem:[#allocation2 + $0x68] sm:$0xff]
  %v73 = vld [vmem:[#allocation2 + $0x70] sm:$0xff]
  %v74 = vld [vmem:[#allocation2 + $0x78] sm:$0xff]
  %v75 = vld [vmem:[%s1] sm:$0xf]
  %v76 = vld [vmem:[%s1 + $0x4] sm:$0xf]
  %v77 = vld [vmem:[%s1 + $0x8] sm:$0xf]
  %v78 = vld [vmem:[%s1 + $0xc] sm:$0xf]
  %v79 = vld [vmem:[%s1 + $0x10] sm:$0xf]
  %v80 = vld [vmem:[%s1 + $0x14] sm:$0xf]
  %v81 = vld [vmem:[%s1 + $0x18] sm:$0xf]
  %v82 = vld [vmem:[%s1 + $0x1c] sm:$0xf]
  %v83 = vld [vmem:[%s1 + $0x20] sm:$0xf]
  %v84 = vld [vmem:[%s1 + $0x24] sm:$0xf]
  %v85 = vld [vmem:[%s1 + $0x28] sm:$0xf]
  %v86 = vld [vmem:[%s1 + $0x2c] sm:$0xf]
  %v87 = vld [vmem:[%s1 + $0x30] sm:$0xf]
  %v88 = vld [vmem:[%s1 + $0x34] sm:$0xf]
  %v89 = vld [vmem:[%s1 + $0x38] sm:$0xf]
  %v90 = vld [vmem:[%s1 + $0x3c] sm:$0xf]
  %v107 = vunpack.c.l.b16 %v75
  %v108 = vunpack.c.l.b16 %v76
  %v109 = vunpack.c.l.b16 %v77
  %v110 = vunpack.c.l.b16 %v78
  %v111 = vunpack.c.l.b16 %v79
  %v112 = vunpack.c.l.b16 %v80
  %v113 = vunpack.c.l.b16 %v81
  %v114 = vunpack.c.l.b16 %v82
  %v115 = vunpack.c.l.b16 %v83
  %v116 = vunpack.c.l.b16 %v84
  %v117 = vunpack.c.l.b16 %v85
  %v118 = vunpack.c.l.b16 %v86
  %v119 = vunpack.c.l.b16 %v87
  %v120 = vunpack.c.l.b16 %v88
  %v121 = vunpack.c.l.b16 %v89
  %v122 = vunpack.c.l.b16 %v90
  %v123 = vpack.c.b16 %v108, %v107
  %v124 = vpack.c.b16 %v110, %v109
  %v125 = vpack.c.b16 %v112, %v111
  %v126 = vpack.c.b16 %v114, %v113
  %v127 = vpack.c.b16 %v116, %v115
  %v128 = vpack.c.b16 %v118, %v117
  %v129 = vpack.c.b16 %v120, %v119
  %v130 = vpack.c.b16 %v122, %v121
  %v155 = vunpack.c.l.b16 %v43
  %v156 = vunpack.c.l.b16 %v44
  %v157 = vunpack.c.l.b16 %v45
  %v158 = vunpack.c.l.b16 %v46
  %v159 = vunpack.c.l.b16 %v47
  %v160 = vunpack.c.l.b16 %v48
  %v161 = vunpack.c.l.b16 %v49
  %v162 = vunpack.c.l.b16 %v50
  %v163 = vunpack.c.l.b16 %v51
  %v164 = vunpack.c.l.b16 %v52
  %v165 = vunpack.c.l.b16 %v53
  %v166 = vunpack.c.l.b16 %v54
  %v167 = vunpack.c.l.b16 %v55
  %v168 = vunpack.c.l.b16 %v56
  %v169 = vunpack.c.l.b16 %v57
  %v170 = vunpack.c.l.b16 %v58
  %v171 = vpack.c.b16 %v156, %v155
  %v172 = vpack.c.b16 %v158, %v157
  %v173 = vpack.c.b16 %v160, %v159
  %v174 = vpack.c.b16 %v162, %v161
  %v175 = vpack.c.b16 %v164, %v163
  %v176 = vpack.c.b16 %v166, %v165
  %v177 = vpack.c.b16 %v168, %v167
  %v178 = vpack.c.b16 %v170, %v169
  %187 = vmatprep.subr.bf16.mxu0 0
  %188 = vmatpush1.bf16.msra.mxu0 %v171
  %189 = vmatprep.subr.bf16.mxu0 0
  %190 = vmatpush1.bf16.msra.mxu0 %v172
  %191 = vmatprep.subr.bf16.mxu0 0
  %192 = vmatpush1.bf16.msra.mxu0 %v173
  %193 = vmatprep.subr.bf16.mxu0 0
  %194 = vmatpush1.bf16.msra.mxu0 %v174
  %195 = vmatprep.subr.bf16.mxu0 0
  %196 = vmatpush1.bf16.msra.mxu0 %v175
  %197 = vmatprep.subr.bf16.mxu0 0
  %198 = vmatpush1.bf16.msra.mxu0 %v176
  %199 = vmatprep.subr.bf16.mxu0 0
  %200 = vmatpush1.bf16.msra.mxu0 %v177
  %201 = vmatprep.subr.bf16.mxu0 0
  %202 = vmatpush1.bf16.msra.mxu0 %v178
  %203 = vmatprep.subr.bf16.mxu0 0
  %204 = vmatpush1.bf16.msra.mxu0 0
  %205 = vmatprep.subr.bf16.mxu0 0
  %206 = vmatpush1.bf16.msra.mxu0 0
  %207 = vmatprep.subr.bf16.mxu0 0
  %208 = vmatpush1.bf16.msra.mxu0 0
  %209 = vmatprep.subr.bf16.mxu0 0
  %210 = vmatpush1.bf16.msra.mxu0 0
  %211 = vmatprep.subr.bf16.mxu0 0
  %212 = vmatpush1.bf16.msra.mxu0 0
  %213 = vmatprep.subr.bf16.mxu0 0
  %214 = vmatpush1.bf16.msra.mxu0 0
  %215 = vmatprep.subr.bf16.mxu0 0
  %216 = vmatpush1.bf16.msra.mxu0 0
  %217 = vmatprep.subr.bf16.mxu0 0
  %218 = vmatpush1.bf16.msra.mxu0 0
  %219 = vmatprep.mubr.bf16.mxu0 0
  %220 = vmatmul.mubr.bf16.gmra.mrb[0].mxu0 %v123
  %v221 = vpop.f32.mrb[0].mxu0
  %v222 = vadd.f32 0.0, %v221
  %v223 = vpop.f32.mrb[0].mxu0
  %v224 = vpop.f32.mrb[0].mxu0
  %v225 = vadd.f32 0.0, %v224
  %v226 = vpop.f32.mrb[0].mxu0
  %227 = vmatprep.mubr.bf16.mxu0 0
  %228 = vmatmul.mubr.bf16.gmra.mrb[0].mxu0 %v124
  %v229 = vpop.f32.mrb[0].mxu0
  %v230 = vadd.f32 0.0, %v229
  %v231 = vpop.f32.mrb[0].mxu0
  %v232 = vpop.f32.mrb[0].mxu0
  %v233 = vadd.f32 0.0, %v232
  %v234 = vpop.f32.mrb[0].mxu0
  %235 = vmatprep.mubr.bf16.mxu0 0
  %236 = vmatmul.mubr.bf16.gmra.mrb[0].mxu0 %v125
  %v237 = vpop.f32.mrb[0].mxu0
  %v238 = vadd.f32 0.0, %v237
  %v239 = vpop.f32.mrb[0].mxu0
  %v240 = vpop.f32.mrb[0].mxu0
  %v241 = vadd.f32 0.0, %v240
  %v242 = vpop.f32.mrb[0].mxu0
  %243 = vmatprep.mubr.bf16.mxu0 0
  %244 = vmatmul.mubr.bf16.gmra.mrb[0].mxu0 %v126
  %v245 = vpop.f32.mrb[0].mxu0
  %v246 = vadd.f32 0.0, %v245
  %v247 = vpop.f32.mrb[0].mxu0
  %v248 = vpop.f32.mrb[0].mxu0
  %v249 = vadd.f32 0.0, %v248
  %v250 = vpop.f32.mrb[0].mxu0
  %251 = vmatprep.mubr.bf16.mxu0 0
  %252 = vmatmul.mubr.bf16.gmra.mrb[0].mxu0 %v127
  %v253 = vpop.f32.mrb[0].mxu0
  %v254 = vadd.f32 0.0, %v253
  %v255 = vpop.f32.mrb[0].mxu0
  %v256 = vpop.f32.mrb[0].mxu0
  %v257 = vadd.f32 0.0, %v256
  %v258 = vpop.f32.mrb[0].mxu0
  %259 = vmatprep.mubr.bf16.mxu0 0
  %260 = vmatmul.mubr.bf16.gmra.mrb[0].mxu0 %v128
  %v261 = vpop.f32.mrb[0].mxu0
  %v262 = vadd.f32 0.0, %v261
  %v263 = vpop.f32.mrb[0].mxu0
  %v264 = vpop.f32.mrb[0].mxu0
  %v265 = vadd.f32 0.0, %v264
  %v266 = vpop.f32.mrb[0].mxu0
  %267 = vmatprep.mubr.bf16.mxu0 0
  %268 = vmatmul.mubr.bf16.gmra.mrb[0].mxu0 %v129
  %v269 = vpop.f32.mrb[0].mxu0
  %v270 = vadd.f32 0.0, %v269
  %v271 = vpop.f32.mrb[0].mxu0
  %v272 = vpop.f32.mrb[0].mxu0
  %v273 = vadd.f32 0.0, %v272
  %v274 = vpop.f32.mrb[0].mxu0
  %275 = vmatprep.mubr.bf16.mxu0 0
  %276 = vmatmul.mubr.bf16.gmra.mrb[0].mxu0 %v130
  %v277 = vpop.f32.mrb[0].mxu0
  %v278 = vadd.f32 0.0, %v277
  %v279 = vpop.f32.mrb[0].mxu0
  %v280 = vpop.f32.mrb[0].mxu0
  %v281 = vadd.f32 0.0, %v280
  %v282 = vpop.f32.mrb[0].mxu0
  %283 = vdwg.mxu0
  %v284 = vadd.f32 %v59, %v222
  %v285 = vadd.f32 %v60, %v225
  %v286 = vadd.f32 %v61, %v230
  %v287 = vadd.f32 %v62, %v233
  %v288 = vadd.f32 %v63, %v238
  %v289 = vadd.f32 %v64, %v241
  %v290 = vadd.f32 %v65, %v246
  %v291 = vadd.f32 %v66, %v249
  %v292 = vadd.f32 %v67, %v254
  %v293 = vadd.f32 %v68, %v257
  %v294 = vadd.f32 %v69, %v262
  %v295 = vadd.f32 %v70, %v265
  %v296 = vadd.f32 %v71, %v270
  %v297 = vadd.f32 %v72, %v273
  %v298 = vadd.f32 %v73, %v278
  %v299 = vadd.f32 %v74, %v281
  %300 = vst [vmem:[#allocation2] sm:$0xff] %v284
  %301 = vst [vmem:[#allocation2 + $0x8] sm:$0xff] %v285
  %302 = vst [vmem:[#allocation2 + $0x10] sm:$0xff] %v286
  %303 = vst [vmem:[#allocation2 + $0x18] sm:$0xff] %v287
  %304 = vst [vmem:[#allocation2 + $0x20] sm:$0xff] %v288
  %305 = vst [vmem:[#allocation2 + $0x28] sm:$0xff] %v289
  %306 = vst [vmem:[#allocation2 + $0x30] sm:$0xff] %v290
  %307 = vst [vmem:[#allocation2 + $0x38] sm:$0xff] %v291
  %308 = vst [vmem:[#allocation2 + $0x40] sm:$0xff] %v292
  %309 = vst [vmem:[#allocation2 + $0x48] sm:$0xff] %v293
  %310 = vst [vmem:[#allocation2 + $0x50] sm:$0xff] %v294
  %311 = vst [vmem:[#allocation2 + $0x58] sm:$0xff] %v295
  %312 = vst [vmem:[#allocation2 + $0x60] sm:$0xff] %v296
  %313 = vst [vmem:[#allocation2 + $0x68] sm:$0xff] %v297
  %314 = vst [vmem:[#allocation2 + $0x70] sm:$0xff] %v298
  %315 = vst [vmem:[#allocation2 + $0x78] sm:$0xff] %v299
  // Predicated region
  $region22: #{gwgcn_forward.5} parent=0 // pred_check
    %p316 = pneg %p18
  $region23: #{gwgcn_forward.5} parent=0 // pred_check_branch
    %318 = sbr.rel (%p316) target = $region25
  $region24: #{gwgcn_forward.5} parent=0 // pred_region
    %v319 = vld [vmem:[#allocation2] sm:$0xff]
    %v320 = vld [vmem:[#allocation2 + $0x8] sm:$0xff]
    %v321 = vld [vmem:[#allocation2 + $0x10] sm:$0xff]
    %v322 = vld [vmem:[#allocation2 + $0x18] sm:$0xff]
    %v323 = vld [vmem:[#allocation2 + $0x20] sm:$0xff]
    %v324 = vld [vmem:[#allocation2 + $0x28] sm:$0xff]
    %v325 = vld [vmem:[#allocation2 + $0x30] sm:$0xff]
    %v326 = vld [vmem:[#allocation2 + $0x38] sm:$0xff]
    %v327 = vld [vmem:[#allocation2 + $0x40] sm:$0xff]
    %v328 = vld [vmem:[#allocation2 + $0x48] sm:$0xff]
    %v329 = vld [vmem:[#allocation2 + $0x50] sm:$0xff]
    %v330 = vld [vmem:[#allocation2 + $0x58] sm:$0xff]
    %v331 = vld [vmem:[#allocation2 + $0x60] sm:$0xff]
    %v332 = vld [vmem:[#allocation2 + $0x68] sm:$0xff]
    %v333 = vld [vmem:[#allocation2 + $0x70] sm:$0xff]
    %v334 = vld [vmem:[#allocation2 + $0x78] sm:$0xff]
    %v335 = vld [vmem:[%s2] sm:$0xff]
    %v336 = vld [vmem:[%s2 + $0x8] sm:$0xff]
    %v337 = vld [vmem:[%s2 + $0x10] sm:$0xff]
    %v338 = vld [vmem:[%s2 + $0x18] sm:$0xff]
    %v339 = vld [vmem:[%s2 + $0x20] sm:$0xff]
    %v340 = vld [vmem:[%s2 + $0x28] sm:$0xff]
    %v341 = vld [vmem:[%s2 + $0x30] sm:$0xff]
    %v342 = vld [vmem:[%s2 + $0x38] sm:$0xff]
    %v343 = vld [vmem:[%s2 + $0x40] sm:$0xff]
    %v344 = vld [vmem:[%s2 + $0x48] sm:$0xff]
    %v345 = vld [vmem:[%s2 + $0x50] sm:$0xff]
    %v346 = vld [vmem:[%s2 + $0x58] sm:$0xff]
    %v347 = vld [vmem:[%s2 + $0x60] sm:$0xff]
    %v348 = vld [vmem:[%s2 + $0x68] sm:$0xff]
    %v349 = vld [vmem:[%s2 + $0x70] sm:$0xff]
    %v350 = vld [vmem:[%s2 + $0x78] sm:$0xff]
    %v351 = vld [vmem:[%s3] sm:$0x1]
    %v353 = vlaneseq
    %v354 = vshrl.u32 %v353, 7
    %v355 = vsub.s32 0, %v354
    %v356 = vrot.slane %v351, %v355
    %358 = vmatprep.subr.mxu0 0.0
    %359 = vmatpush1.msra.mxu0 %v335
    %360 = vmatprep.subr.mxu0 0.0
    %361 = vmatpush1.msra.mxu0 %v336
    %362 = vmatprep.subr.mxu0 0.0
    %363 = vmatpush1.msra.mxu0 %v337
    %364 = vmatprep.subr.mxu0 0.0
    %365 = vmatpush1.msra.mxu0 %v338
    %366 = vmatprep.subr.mxu0 0.0
    %367 = vmatpush1.msra.mxu0 %v339
    %368 = vmatprep.subr.mxu0 0.0
    %369 = vmatpush1.msra.mxu0 %v340
    %370 = vmatprep.subr.mxu0 0.0
    %371 = vmatpush1.msra.mxu0 %v341
    %372 = vmatprep.subr.mxu0 0.0
    %373 = vmatpush1.msra.mxu0 %v342
    %374 = vmatprep.subr.mxu0 0.0
    %375 = vmatpush1.msra.mxu0 %v343
    %376 = vmatprep.subr.mxu0 0.0
    %377 = vmatpush1.msra.mxu0 %v344
    %378 = vmatprep.subr.mxu0 0.0
    %379 = vmatpush1.msra.mxu0 %v345
    %380 = vmatprep.subr.mxu0 0.0
    %381 = vmatpush1.msra.mxu0 %v346
    %382 = vmatprep.subr.mxu0 0.0
    %383 = vmatpush1.msra.mxu0 %v347
    %384 = vmatprep.subr.mxu0 0.0
    %385 = vmatpush1.msra.mxu0 %v348
    %386 = vmatprep.subr.mxu0 0.0
    %387 = vmatpush1.msra.mxu0 %v349
    %388 = vmatprep.subr.mxu0 0.0
    %389 = vmatpush1.msra.mxu0 %v350
    %390 = vmatprep.subr.mxu0 0.0
    %391 = vmatpush1.msra.mxu0 0.0
    %392 = vmatprep.subr.mxu0 0.0
    %393 = vmatpush1.msra.mxu0 0.0
    %394 = vmatprep.subr.mxu0 0.0
    %395 = vmatpush1.msra.mxu0 0.0
    %396 = vmatprep.subr.mxu0 0.0
    %397 = vmatpush1.msra.mxu0 0.0
    %398 = vmatprep.subr.mxu0 0.0
    %399 = vmatpush1.msra.mxu0 0.0
    %400 = vmatprep.subr.mxu0 0.0
    %401 = vmatpush1.msra.mxu0 0.0
    %402 = vmatprep.subr.mxu0 0.0
    %403 = vmatpush1.msra.mxu0 0.0
    %404 = vmatprep.subr.mxu0 0.0
    %405 = vmatpush1.msra.mxu0 0.0
    %406 = vmatprep.subr.mxu0 0.0
    %407 = vmatpush1.msra.mxu0 0.0
    %408 = vmatprep.subr.mxu0 0.0
    %409 = vmatpush1.msra.mxu0 0.0
    %410 = vmatprep.subr.mxu0 0.0
    %411 = vmatpush1.msra.mxu0 0.0
    %412 = vmatprep.subr.mxu0 0.0
    %413 = vmatpush1.msra.mxu0 0.0
    %414 = vmatprep.subr.mxu0 0.0
    %415 = vmatpush1.msra.mxu0 0.0
    %416 = vmatprep.subr.mxu0 0.0
    %417 = vmatpush1.msra.mxu0 0.0
    %418 = vmatprep.subr.mxu0 0.0
    %419 = vmatpush1.msra.mxu0 0.0
    %420 = vmatprep.subr.mxu0 0.0
    %421 = vmatpush1.msra.mxu0 0.0
    %422 = vmatprep.mubr.f32.mxu0 0.0
    %423 = vmatmul.mubr.f32.gmra.mrb[0].mxu0 %v319
    %v424 = vpop.f32.mrb[0].mxu0
    %v425 = vadd.f32 %v356, %v424
    %v426 = vpop.f32.mrb[0].mxu0
    %427 = vmatprep.mubr.f32.mxu0 0.0
    %428 = vmatmul.mubr.f32.gmra.mrb[0].mxu0 %v320
    %v429 = vpop.f32.mrb[0].mxu0
    %v430 = vadd.f32 %v356, %v429
    %v431 = vpop.f32.mrb[0].mxu0
    %432 = vmatprep.mubr.f32.mxu0 0.0
    %433 = vmatmul.mubr.f32.gmra.mrb[0].mxu0 %v321
    %v434 = vpop.f32.mrb[0].mxu0
    %v435 = vadd.f32 %v356, %v434
    %v436 = vpop.f32.mrb[0].mxu0
    %437 = vmatprep.mubr.f32.mxu0 0.0
    %438 = vmatmul.mubr.f32.gmra.mrb[0].mxu0 %v322
    %v439 = vpop.f32.mrb[0].mxu0
    %v440 = vadd.f32 %v356, %v439
    %v441 = vpop.f32.mrb[0].mxu0
    %442 = vmatprep.mubr.f32.mxu0 0.0
    %443 = vmatmul.mubr.f32.gmra.mrb[0].mxu0 %v323
    %v444 = vpop.f32.mrb[0].mxu0
    %v445 = vadd.f32 %v356, %v444
    %v446 = vpop.f32.mrb[0].mxu0
    %447 = vmatprep.mubr.f32.mxu0 0.0
    %448 = vmatmul.mubr.f32.gmra.mrb[0].mxu0 %v324
    %v449 = vpop.f32.mrb[0].mxu0
    %v450 = vadd.f32 %v356, %v449
    %v451 = vpop.f32.mrb[0].mxu0
    %452 = vmatprep.mubr.f32.mxu0 0.0
    %453 = vmatmul.mubr.f32.gmra.mrb[0].mxu0 %v325
    %v454 = vpop.f32.mrb[0].mxu0
    %v455 = vadd.f32 %v356, %v454
    %v456 = vpop.f32.mrb[0].mxu0
    %457 = vmatprep.mubr.f32.mxu0 0.0
    %458 = vmatmul.mubr.f32.gmra.mrb[0].mxu0 %v326
    %v459 = vpop.f32.mrb[0].mxu0
    %v460 = vadd.f32 %v356, %v459
    %v461 = vpop.f32.mrb[0].mxu0
    %462 = vmatprep.mubr.f32.mxu0 0.0
    %463 = vmatmul.mubr.f32.gmra.mrb[0].mxu0 %v327
    %v464 = vpop.f32.mrb[0].mxu0
    %v465 = vadd.f32 %v356, %v464
    %v466 = vpop.f32.mrb[0].mxu0
    %467 = vmatprep.mubr.f32.mxu0 0.0
    %468 = vmatmul.mubr.f32.gmra.mrb[0].mxu0 %v328
    %v469 = vpop.f32.mrb[0].mxu0
    %v470 = vadd.f32 %v356, %v469
    %v471 = vpop.f32.mrb[0].mxu0
    %472 = vmatprep.mubr.f32.mxu0 0.0
    %473 = vmatmul.mubr.f32.gmra.mrb[0].mxu0 %v329
    %v474 = vpop.f32.mrb[0].mxu0
    %v475 = vadd.f32 %v356, %v474
    %v476 = vpop.f32.mrb[0].mxu0
    %477 = vmatprep.mubr.f32.mxu0 0.0
    %478 = vmatmul.mubr.f32.gmra.mrb[0].mxu0 %v330
    %v479 = vpop.f32.mrb[0].mxu0
    %v480 = vadd.f32 %v356, %v479
    %v481 = vpop.f32.mrb[0].mxu0
    %482 = vmatprep.mubr.f32.mxu0 0.0
    %483 = vmatmul.mubr.f32.gmra.mrb[0].mxu0 %v331
    %v484 = vpop.f32.mrb[0].mxu0
    %v485 = vadd.f32 %v356, %v484
    %v486 = vpop.f32.mrb[0].mxu0
    %487 = vmatprep.mubr.f32.mxu0 0.0
    %488 = vmatmul.mubr.f32.gmra.mrb[0].mxu0 %v332
    %v489 = vpop.f32.mrb[0].mxu0
    %v490 = vadd.f32 %v356, %v489
    %v491 = vpop.f32.mrb[0].mxu0
    %492 = vmatprep.mubr.f32.mxu0 0.0
    %493 = vmatmul.mubr.f32.gmra.mrb[0].mxu0 %v333
    %v494 = vpop.f32.mrb[0].mxu0
    %v495 = vadd.f32 %v356, %v494
    %v496 = vpop.f32.mrb[0].mxu0
    %497 = vmatprep.mubr.f32.mxu0 0.0
    %498 = vmatmul.mubr.f32.gmra.mrb[0].mxu0 %v334
    %v499 = vpop.f32.mrb[0].mxu0
    %v500 = vadd.f32 %v356, %v499
    %v501 = vpop.f32.mrb[0].mxu0
    %502 = vdwg.mxu0
    %v503 = vtanh.pop %v425
    %v504 = vtanh.pop %v430
    %v505 = vtanh.pop %v435
    %v506 = vtanh.pop %v440
    %v507 = vtanh.pop %v445
    %v508 = vtanh.pop %v450
    %v509 = vtanh.pop %v455
    %v510 = vtanh.pop %v460
    %v511 = vtanh.pop %v465
    %v512 = vtanh.pop %v470
    %v513 = vtanh.pop %v475
    %v514 = vtanh.pop %v480
    %v515 = vtanh.pop %v485
    %v516 = vtanh.pop %v490
    %v517 = vtanh.pop %v495
    %v518 = vtanh.pop %v500
    %v519 = vpack.c.bf16 %v504, %v503
    %v520 = vpack.c.bf16 %v506, %v505
    %v521 = vpack.c.bf16 %v508, %v507
    %v522 = vpack.c.bf16 %v510, %v509
    %v523 = vpack.c.bf16 %v512, %v511
    %v524 = vpack.c.bf16 %v514, %v513
    %v525 = vpack.c.bf16 %v516, %v515
    %v526 = vpack.c.bf16 %v518, %v517
    %v535 = vunpack.c.l.b16 %v519
    %v536 = vunpack.c.h.b16 %v519
    %v537 = vunpack.c.l.b16 %v520
    %v538 = vunpack.c.h.b16 %v520
    %v539 = vunpack.c.l.b16 %v521
    %v540 = vunpack.c.h.b16 %v521
    %v541 = vunpack.c.l.b16 %v522
    %v542 = vunpack.c.h.b16 %v522
    %v543 = vunpack.c.l.b16 %v523
    %v544 = vunpack.c.h.b16 %v523
    %v545 = vunpack.c.l.b16 %v524
    %v546 = vunpack.c.h.b16 %v524
    %v547 = vunpack.c.l.b16 %v525
    %v548 = vunpack.c.h.b16 %v525
    %v549 = vunpack.c.l.b16 %v526
    %v550 = vunpack.c.h.b16 %v526
    %v551 = vpack.c.b16 %v535, %v535
    %v552 = vpack.c.b16 %v536, %v536
    %v553 = vpack.c.b16 %v537, %v537
    %v554 = vpack.c.b16 %v538, %v538
    %v555 = vpack.c.b16 %v539, %v539
    %v556 = vpack.c.b16 %v540, %v540
    %v557 = vpack.c.b16 %v541, %v541
    %v558 = vpack.c.b16 %v542, %v542
    %v559 = vpack.c.b16 %v543, %v543
    %v560 = vpack.c.b16 %v544, %v544
    %v561 = vpack.c.b16 %v545, %v545
    %v562 = vpack.c.b16 %v546, %v546
    %v563 = vpack.c.b16 %v547, %v547
    %v564 = vpack.c.b16 %v548, %v548
    %v565 = vpack.c.b16 %v549, %v549
    %v566 = vpack.c.b16 %v550, %v550
    %583 = vst [vmem:[%s4] sm:$0xf] %v551
    %584 = vst [vmem:[%s4 + $0x4] sm:$0xf] %v552
    %585 = vst [vmem:[%s4 + $0x8] sm:$0xf] %v553
    %586 = vst [vmem:[%s4 + $0xc] sm:$0xf] %v554
    %587 = vst [vmem:[%s4 + $0x10] sm:$0xf] %v555
    %588 = vst [vmem:[%s4 + $0x14] sm:$0xf] %v556
    %589 = vst [vmem:[%s4 + $0x18] sm:$0xf] %v557
    %590 = vst [vmem:[%s4 + $0x1c] sm:$0xf] %v558
    %591 = vst [vmem:[%s4 + $0x20] sm:$0xf] %v559
    %592 = vst [vmem:[%s4 + $0x24] sm:$0xf] %v560
    %593 = vst [vmem:[%s4 + $0x28] sm:$0xf] %v561
    %594 = vst [vmem:[%s4 + $0x2c] sm:$0xf] %v562
    %595 = vst [vmem:[%s4 + $0x30] sm:$0xf] %v563
    %596 = vst [vmem:[%s4 + $0x34] sm:$0xf] %v564
    %597 = vst [vmem:[%s4 + $0x38] sm:$0xf] %v565
    %598 = vst [vmem:[%s4 + $0x3c] sm:$0xf] %v566
  $region25: #{gwgcn_forward.5} parent=0 // pred_fallthru
    _
  // Predicated region
  $region26: #{gwgcn_forward.5} parent=0 // pred_check
    _
  $region27: #{gwgcn_forward.5} parent=0 // pred_check_branch
    %600 = sbr.rel (0) target = $region29
  $region28: #{gwgcn_forward.5} parent=0 // pred_region
    _
  $region29: #{gwgcn_forward.5} parent=0 // pred_fallthru
    _
  // Predicated region
  $region30: #{gwgcn_forward.5} parent=0 // pred_check
    _
  $region31: #{gwgcn_forward.5} parent=0 // pred_check_branch
    %602 = sbr.rel (0) target = $region33
  $region32: #{gwgcn_forward.5} parent=0 // pred_region
    _
  $region33: #{gwgcn_forward.5} parent=0 // pred_fallthru
    _

</llo_original>
